<compile_context>
chip_gen: v6e
topology: v6e:2x2x1
jax: 0.10.0
libtpu: 0.0.40
codegen_flags: <defaults>
</compile_context>

<pallas_src>
import functools

import jax
import jax.numpy as jnp
from jax.experimental import pallas as pl
from jax.experimental.pallas import tpu as pltpu


def _ceil_to(x, m):
    return ((x + m - 1) // m) * m


# ----------------------------------------------------------------------------
# Pallas kernel: fused im2col + deep-K matmul + BN bias + ReLU
# ----------------------------------------------------------------------------
def _conv_bn_relu_kernel(x_ref, w_ref, b_ref, o_ref, *,
                         kh, kw, ho, wo, cin_p, stride, dilation, th,
                         add_bias, relu):
    # x_ref: (nb, Hp, Wp, Cin_p)          spatially padded NHWC images (bf16)
    # w_ref: (kh*kw*Cin_p, TCOUT)         BN-scale-folded conv weight (bf16)
    # b_ref: (1, TCOUT)                   folded BN bias (f32)
    # o_ref: (nb, ho*wo, TCOUT)           output rows (bf16, lane-dense)
    nb = x_ref.shape[0]
    w = w_ref[...]                        # weight tile stays live across chunks
    bias = b_ref[...] if add_bias else None

    def do_rows(xs, rows):
        # xs: (nb, in_rows, Wp, Cin_p) input rows covering `rows` output rows.
        # Build the (M, kh*kw*Cin_p) patch matrix and do ONE deep-K matmul.
        taps = []
        for r in range(kh * kw):
            i = (r // kw) * dilation
            j = (r % kw) * dilation
            if stride == 1:
                win = xs[:, i:i + rows, j:j + wo, :]
            else:
                # TODO(synk): strided-window path (stride > 1) is not
                # exercised by the demo; verify lowering before relying on it.
                win = xs[:, i:i + (rows - 1) * stride + 1:stride,
                         j:j + (wo - 1) * stride + 1:stride, :]
            taps.append(win.reshape(win.shape[0] * rows * wo, cin_p))
        patches = jnp.concatenate(taps, axis=-1)          # (M, kh*kw*Cin_p) bf16
        acc = jnp.dot(patches, w,
                      preferred_element_type=jnp.float32)  # f32 accumulate on MXU
        if bias is not None:
            acc = acc + bias
        if relu:
            acc = jnp.maximum(acc, 0.0)
        return acc

    n_chunks = (ho + th - 1) // th
    for c in range(n_chunks):
        r0 = c * th
        rows = min(th, ho - r0)
        in_rows = (rows - 1) * stride + (kh - 1) * dilation + 1
        xs = x_ref[:, r0 * stride:r0 * stride + in_rows, :, :]
        acc = do_rows(xs, rows)
        o_ref[:, r0 * wo:(r0 + rows) * wo, :] = (
            acc.reshape(nb, rows * wo, -1).astype(o_ref.dtype))


# ----------------------------------------------------------------------------
# Tile planning: images/step, Cout tile, in-kernel row chunk, VMEM request
# ----------------------------------------------------------------------------
def _plan(n, ho, wo, hp, wp, cin_p, r_taps, cout_p):
    # Images per grid step: batch small feature maps (M2Det TUM 10x10 .. 1x1)
    # so the matmul M dim is MXU-friendly (>= ~256 rows).
    nb = 1
    if ho * wo < 256:
        for cand in range(n, 0, -1):
            if n % cand == 0 and cand * ho * wo <= 1024:
                nb = cand
                break

    # Lane-dense Cout tile: 256-wide where it divides, else 128.
    tcout = 256 if cout_p % 256 == 0 else 128

    def row_chunk(nb_):
        # Output rows computed per in-kernel matmul; bounds the live deep-K
        # patch matrix (~512 x kh*kw*Cin_p) for large spatial maps.
        if nb_ > 1 or ho * wo <= 512:
            return ho
        return max(1, 512 // wo)

    # Generation-aware VMEM target (~48 MiB of v7x's 64, ~96 MiB on 128 MiB parts).
    try:
        cap = int(pltpu.get_tpu_info().vmem_capacity_bytes) * 3 // 4
    except Exception:
        cap = 48 * 1024 * 1024

    def need(nb_, tcout_):
        th = row_chunk(nb_)
        m = nb_ * th * wo
        x_blk = nb_ * hp * _ceil_to(wp, 16) * cin_p * 2            # bf16 input
        w_blk = _ceil_to(r_taps * cin_p, 16) * tcout_ * 2          # bf16 weight
        b_blk = 8 * tcout_ * 4                                     # f32 bias
        o_blk = nb_ * _ceil_to(ho * wo, 16) * tcout_ * 2           # bf16 output
        patches = _ceil_to(m, 16) * r_taps * cin_p * 2             # live value
        acc = _ceil_to(m, 8) * tcout_ * 4                          # live value
        return 2 * (x_blk + w_blk + b_blk + o_blk) + patches + acc + (2 << 20)

    # Shrink tiles until the double-buffered working set actually fits.
    while need(nb, tcout) > cap and tcout > 128:
        tcout //= 2
    while need(nb, tcout) > cap and nb > 1:
        nb = next(d for d in range(nb - 1, 0, -1) if n % d == 0)
    # TODO(synk): if a single image still overflows VMEM (very large spatial
    # maps), add an Ho grid axis with a (kh-1)*dilation halo via manual DMA.

    # v7x megacore: make sure there are >= 2 "parallel" grid steps even for
    # single-image inference by splitting Cout further.
    if (n // nb) * (cout_p // tcout) < 2 and cout_p >= 256:
        tcout = 128

    vmem_limit = int(min(max(2 * need(nb, tcout), 32 << 20), cap))
    return nb, tcout, row_chunk(nb), vmem_limit


# ----------------------------------------------------------------------------
# BasicConv forward (NCHW in, NCHW out) — matches the PyTorch module
# ----------------------------------------------------------------------------
def basic_conv_forward(x_nchw, params, *, stride=1, padding=0, dilation=1,
                       groups=1, relu=True, bn=True):
    # TODO(synk): groups > 1 (grouped conv) not implemented in the Pallas path.
    assert groups == 1, "only groups=1 supported"

    weight = params["conv_weight"]          # [Cout, Cin, KH, KW] (PyTorch layout)
    cout, cin, kh, kw = weight.shape
    n, _, h, w_in = x_nchw.shape

    # Fold BN (inference mode) into per-channel scale / bias.
    eps = 1e-5
    if bn:
        scale = params["bn_gamma"] / jnp.sqrt(params["bn_running_var"] + eps)
        shift = params["bn_beta"] - params["bn_running_mean"] * scale
    else:
        scale = jnp.ones((cout,), jnp.float32)
        shift = jnp.zeros((cout,), jnp.float32)
    has_conv_bias = params.get("conv_bias") is not None
    if has_conv_bias:
        shift = shift + params["conv_bias"].astype(jnp.float32) * scale
    add_bias = bn or has_conv_bias

    cout_p = _ceil_to(cout, 128)   # lane-dense output channels (full vst stores)
    cin_p = _ceil_to(cin, 128)     # keeps the deep-K concat lane-aligned
    r_taps = kh * kw

    # [Cout,Cin,KH,KW] -> [KH,KW,Cin,Cout]*scale -> pad -> (KH*KW*Cin_p, Cout_p)
    wmat = jnp.transpose(weight.astype(jnp.float32), (2, 3, 1, 0))
    wmat = wmat * scale[None, None, None, :]
    wmat = jnp.pad(wmat, ((0, 0), (0, 0), (0, cin_p - cin), (0, cout_p - cout)))
    wmat = wmat.reshape(r_taps * cin_p, cout_p).astype(jnp.bfloat16)
    bias_p = jnp.pad(shift.astype(jnp.float32),
                     (0, cout_p - cout)).reshape(1, cout_p)

    # NCHW -> NHWC, spatial zero pad, channel pad, bf16 (one pass over raw input).
    x_nhwc = jnp.transpose(x_nchw, (0, 2, 3, 1))
    x_p = jnp.pad(x_nhwc, ((0, 0), (padding, padding), (padding, padding),
                           (0, cin_p - cin))).astype(jnp.bfloat16)
    hp, wp = h + 2 * padding, w_in + 2 * padding
    eff_kh = dilation * (kh - 1) + 1
    eff_kw = dilation * (kw - 1) + 1
    ho = (hp - eff_kh) // stride + 1
    wo = (wp - eff_kw) // stride + 1

    nb, tcout, th, vmem_limit = _plan(n, ho, wo, hp, wp, cin_p, r_taps, cout_p)

    kernel = functools.partial(
        _conv_bn_relu_kernel, kh=kh, kw=kw, ho=ho, wo=wo, cin_p=cin_p,
        stride=stride, dilation=dilation, th=th, add_bias=add_bias, relu=relu)

    grid = (n // nb, cout_p // tcout)
    out3d = pl.pallas_call(
        kernel,
        out_shape=jax.ShapeDtypeStruct((n, ho * wo, cout_p), jnp.bfloat16),
        grid_spec=pltpu.PrefetchScalarGridSpec(
            num_scalar_prefetch=0,
            grid=grid,  # (image blocks, Cout tiles) — both parallel (megacore)
            in_specs=[
                pl.BlockSpec((nb, hp, wp, cin_p), lambda m, c: (m, 0, 0, 0)),
                pl.BlockSpec((r_taps * cin_p, tcout), lambda m, c: (0, c)),
                pl.BlockSpec((1, tcout), lambda m, c: (0, c)),
            ],
            out_specs=pl.BlockSpec((nb, ho * wo, tcout),
                                   lambda m, c: (m, 0, c)),
        ),
        compiler_params=pltpu.CompilerParams(
            dimension_semantics=("parallel", "parallel"),
            vmem_limit_bytes=vmem_limit),
    )(x_p, wmat, bias_p)

    out = out3d.reshape(n, ho, wo, cout_p)[..., :cout]   # drop padded channels
    return jnp.transpose(out, (0, 3, 1, 2))              # NCHW (bf16 activations)


# ----------------------------------------------------------------------------
# Deterministic parameter init (synthetic, no checkpoint)
# ----------------------------------------------------------------------------
def make_params(key, in_planes, out_planes, kernel_size):
    k_w, k_g, k_b, k_m, k_v = jax.random.split(key, 5)
    conv_weight = 0.1 * jax.random.normal(
        k_w, (out_planes, in_planes, kernel_size, kernel_size), jnp.float32)
    return {
        "conv_weight": conv_weight,
        "bn_gamma": 1.0 + 0.1 * jax.random.normal(k_g, (out_planes,), jnp.float32),
        "bn_beta": 0.1 * jax.random.normal(k_b, (out_planes,), jnp.float32),
        "bn_running_mean": 0.1 * jax.random.normal(k_m, (out_planes,), jnp.float32),
        "bn_running_var": jnp.abs(
            1.0 + 0.1 * jax.random.normal(k_v, (out_planes,), jnp.float32)),
    }


# ----------------------------------------------------------------------------
# Pure-JAX reference (f32) for correctness check
# ----------------------------------------------------------------------------
def reference_forward(x_nchw, params, *, stride, padding, dilation, relu, bn):
    y = jax.lax.conv_general_dilated(
        x_nchw.astype(jnp.float32), params["conv_weight"],
        window_strides=(stride, stride),
        padding=((padding, padding), (padding, padding)),
        rhs_dilation=(dilation, dilation),
        dimension_numbers=("NCHW", "OIHW", "NCHW"))
    if bn:
        eps = 1e-5
        scale = params["bn_gamma"] / jnp.sqrt(params["bn_running_var"] + eps)
        bias = params["bn_beta"] - params["bn_running_mean"] * scale
        y = y * scale[None, :, None, None] + bias[None, :, None, None]
    if relu:
        y = jnp.maximum(y, 0.0)
    return y


if __name__ == "__main__":
    key = jax.random.PRNGKey(0)
    k_x, k_p = jax.random.split(key)

    # Small shapes consistent with BasicConv: N=2, Cin=4, H=W=16, Cout=8, k=3.
    N, Cin, H, W = 2, 4, 16, 16
    Cout, ksize, stride, padding, dilation = 8, 3, 1, 1, 1

    x = jax.random.normal(k_x, (N, Cin, H, W), jnp.float32)
    params = make_params(k_p, Cin, Cout, ksize)

    out = basic_conv_forward(x, params, stride=stride, padding=padding,
                             dilation=dilation, relu=True, bn=True)
    out = jax.block_until_ready(out)

    ref = reference_forward(x, params, stride=stride, padding=padding,
                            dilation=dilation, relu=True, bn=True)
    assert out.shape == ref.shape == (N, Cout, H, W)
    out_f32 = out.astype(jnp.float32)
    # bf16 MXU operands + bf16 output activations (f32 accumulation) ->
    # looser tolerance than pure f32.
    max_err = float(jnp.max(jnp.abs(out_f32 - ref)))
    assert jnp.allclose(out_f32, ref, atol=3e-2, rtol=3e-2), max_err

    print("KERNEL_OK")
</pallas_src>

<mosaic_0001>
module attributes {stable_mosaic.version = 11 : i64} {
  func.func @_conv_bn_relu_kernel(%arg0: i32, %arg1: i32, %arg2: memref<1x18x18x128xbf16, #tpu.memory_space<vmem>>, %arg3: memref<1152x128xbf16, #tpu.memory_space<vmem>>, %arg4: memref<1x128xf32, #tpu.memory_space<vmem>>, %arg5: memref<1x256x128xbf16, #tpu.memory_space<vmem>>) attributes {dimension_semantics = [#tpu.dimension_semantics<parallel>, #tpu.dimension_semantics<parallel>], iteration_bounds = array<i64: 2, 1>, scalar_prefetch = 0 : i64, scratch_operands = 0 : i64, tpu.core_type = #tpu.core_type<tc>, window_params = [{transform_indices = @transform_0, window_bounds = array<i64: 1, 18, 18, 128>}, {transform_indices = @transform_1, window_bounds = array<i64: 1152, 128>}, {transform_indices = @transform_2, window_bounds = array<i64: 1, 128>}, {transform_indices = @transform_3, window_bounds = array<i64: 1, 256, 128>}]} {
    %c0 = arith.constant 0 : index
    %c0_0 = arith.constant 0 : index
    %0 = vector.load %arg3[%c0, %c0_0] : memref<1152x128xbf16, #tpu.memory_space<vmem>>, vector<1152x128xbf16>
    %c0_1 = arith.constant 0 : index
    %c0_2 = arith.constant 0 : index
    %1 = vector.load %arg4[%c0_1, %c0_2] : memref<1x128xf32, #tpu.memory_space<vmem>>, vector<1x128xf32>
    %c0_3 = arith.constant 0 : index
    %c0_4 = arith.constant 0 : index
    %c0_5 = arith.constant 0 : index
    %c0_6 = arith.constant 0 : index
    %2 = vector.load %arg2[%c0_3, %c0_4, %c0_5, %c0_6] : memref<1x18x18x128xbf16, #tpu.memory_space<vmem>>, vector<1x18x18x128xbf16>
    %3 = vector.extract_strided_slice %2 {offsets = [0, 0, 0, 0], sizes = [1, 16, 16, 128], strides = [1, 1, 1, 1]} : vector<1x18x18x128xbf16> to vector<1x16x16x128xbf16>
    %4 = vector.shape_cast %3 : vector<1x16x16x128xbf16> to vector<256x128xbf16>
    %5 = vector.extract_strided_slice %2 {offsets = [0, 0, 1, 0], sizes = [1, 16, 16, 128], strides = [1, 1, 1, 1]} : vector<1x18x18x128xbf16> to vector<1x16x16x128xbf16>
    %6 = vector.shape_cast %5 : vector<1x16x16x128xbf16> to vector<256x128xbf16>
    %7 = vector.extract_strided_slice %2 {offsets = [0, 0, 2, 0], sizes = [1, 16, 16, 128], strides = [1, 1, 1, 1]} : vector<1x18x18x128xbf16> to vector<1x16x16x128xbf16>
    %8 = vector.shape_cast %7 : vector<1x16x16x128xbf16> to vector<256x128xbf16>
    %9 = vector.extract_strided_slice %2 {offsets = [0, 1, 0, 0], sizes = [1, 16, 16, 128], strides = [1, 1, 1, 1]} : vector<1x18x18x128xbf16> to vector<1x16x16x128xbf16>
    %10 = vector.shape_cast %9 : vector<1x16x16x128xbf16> to vector<256x128xbf16>
    %11 = vector.extract_strided_slice %2 {offsets = [0, 1, 1, 0], sizes = [1, 16, 16, 128], strides = [1, 1, 1, 1]} : vector<1x18x18x128xbf16> to vector<1x16x16x128xbf16>
    %12 = vector.shape_cast %11 : vector<1x16x16x128xbf16> to vector<256x128xbf16>
    %13 = vector.extract_strided_slice %2 {offsets = [0, 1, 2, 0], sizes = [1, 16, 16, 128], strides = [1, 1, 1, 1]} : vector<1x18x18x128xbf16> to vector<1x16x16x128xbf16>
    %14 = vector.shape_cast %13 : vector<1x16x16x128xbf16> to vector<256x128xbf16>
    %15 = vector.extract_strided_slice %2 {offsets = [0, 2, 0, 0], sizes = [1, 16, 16, 128], strides = [1, 1, 1, 1]} : vector<1x18x18x128xbf16> to vector<1x16x16x128xbf16>
    %16 = vector.shape_cast %15 : vector<1x16x16x128xbf16> to vector<256x128xbf16>
    %17 = vector.extract_strided_slice %2 {offsets = [0, 2, 1, 0], sizes = [1, 16, 16, 128], strides = [1, 1, 1, 1]} : vector<1x18x18x128xbf16> to vector<1x16x16x128xbf16>
    %18 = vector.shape_cast %17 : vector<1x16x16x128xbf16> to vector<256x128xbf16>
    %19 = vector.extract_strided_slice %2 {offsets = [0, 2, 2, 0], sizes = [1, 16, 16, 128], strides = [1, 1, 1, 1]} : vector<1x18x18x128xbf16> to vector<1x16x16x128xbf16>
    %20 = vector.shape_cast %19 : vector<1x16x16x128xbf16> to vector<256x128xbf16>
    %21 = tpu.concatenate %4, %6, %8, %10, %12, %14, %16, %18, %20 in 1 : vector<256x128xbf16>, vector<256x128xbf16>, vector<256x128xbf16>, vector<256x128xbf16>, vector<256x128xbf16>, vector<256x128xbf16>, vector<256x128xbf16>, vector<256x128xbf16>, vector<256x128xbf16> -> vector<256x1152xbf16>
    %cst = arith.constant dense<0.000000e+00> : vector<256x128xf32>
    %22 = tpu.matmul %21, %0, %cst {dimension_numbers = #tpu.dot_dimension_numbers<[1], [0], [0], [1], [0, 0, 1, 1], [], []>} : vector<256x1152xbf16>, vector<1152x128xbf16>, vector<256x128xf32> -> vector<256x128xf32>
    %23 = vector.broadcast %1 : vector<1x128xf32> to vector<256x128xf32>
    %24 = arith.addf %22, %23 : vector<256x128xf32>
    %cst_7 = arith.constant 0.000000e+00 : f32
    %25 = vector.broadcast %cst_7 : f32 to vector<256x128xf32>
    %26 = arith.maximumf %24, %25 : vector<256x128xf32>
    %27 = vector.shape_cast %26 : vector<256x128xf32> to vector<1x256x128xf32>
    %28 = arith.truncf %27 : vector<1x256x128xf32> to vector<1x256x128xbf16>
    %c0_8 = arith.constant 0 : index
    %c0_9 = arith.constant 0 : index
    %c0_10 = arith.constant 0 : index
    %29 = vector.load %arg5[%c0_8, %c0_9, %c0_10] : memref<1x256x128xbf16, #tpu.memory_space<vmem>>, vector<1x256x128xbf16>
    tpu.vector_store %arg5[%c0_8, %c0_9, %c0_10], %28 {strides = array<i32>} : memref<1x256x128xbf16, #tpu.memory_space<vmem>>, vector<1x256x128xbf16>,
    return
  }
  func.func @transform_0(%arg0: i32, %arg1: i32) -> (i32, i32, i32, i32) {
    %c0_i32 = arith.constant 0 : i32
    %c0_i32_0 = arith.constant 0 : i32
    %c0_i32_1 = arith.constant 0 : i32
    %c0_i32_2 = arith.constant 0 : i32
    return %arg0, %c0_i32, %c0_i32_0, %c0_i32_1 : i32, i32, i32, i32
  }
  func.func @transform_1(%arg0: i32, %arg1: i32) -> (i32, i32) {
    %c0_i32 = arith.constant 0 : i32
    %c0_i32_0 = arith.constant 0 : i32
    return %c0_i32, %arg1 : i32, i32
  }
  func.func @transform_2(%arg0: i32, %arg1: i32) -> (i32, i32) {
    %c0_i32 = arith.constant 0 : i32
    %c0_i32_0 = arith.constant 0 : i32
    return %c0_i32, %arg1 : i32, i32
  }
  func.func @transform_3(%arg0: i32, %arg1: i32) -> (i32, i32, i32) {
    %c0_i32 = arith.constant 0 : i32
    %c0_i32_0 = arith.constant 0 : i32
    return %arg0, %c0_i32, %arg1 : i32, i32, i32
  }
}

</mosaic_0001>

<llo_original>
// kernel: tpu_custom_call.1
$region0: #{tpu_custom_call.1}
  #allocation0 [shape = 'u32[]', space=smem, size = 0x4, offset = 0x4, fixed_abs, tag = 'smem constant byte address 0x4 - core index']
  #allocation1 [shape = 'u32[144,128]{1,0:T(1,128)}', space=vmem, size = 0x12000, scoped, tag = 'internal scratch']
  %s0 = inlined_call_operand.vmem [shape: bf16[2,18,18,128], index: 0, kind: input, shape index: {}]
  %s1 = inlined_call_operand.vmem [shape: bf16[1152,128], index: 1, kind: input, shape index: {}]
  %s2 = inlined_call_operand.vmem [shape: f32[1,128], index: 2, kind: input, shape index: {}]
  %s3 = inlined_call_operand.hbm [shape: bf16[2,256,128], index: 3, kind: output, shape index: {}]
  %s4 = sld [smem:[#allocation0]]
  $region45: #{tpu_custom_call.1} parent=0
    _
  %s6 = ssub.s32 1, %s4
  %s7 = scalar_select 0, %s6, %s4
  $region1: #{tpu_custom_call.1} parent=0
    #allocation2 [shape = 'u8[131072]{0}', space=vmem, size = 0x20000, scoped, tag = 'output window, operand 0']
    #allocation3 [shape = 's32[2]{0}', space=sflag, size = 0x8, scoped, tag = 'scoped memory for tpu_custom_call.1']
    %8 = vsyncpa [#allocation3], 0
    %s9 = scalar_lea.sflag [#allocation3], 1
    %10 = vsyncpa %s9, 0
    loop: start=0, step=1, limit=4
    $region2: #{tpu_custom_call.1} parent=1 // loop_pre_header
      _
    $region3: #{tpu_custom_call.1} parent=1 // loop_header
      %s12 = sphi 0, %s16
      %p13 = scmp.ge.s32.totalorder %s12, 4
      %s19 = sphi 0, %s31
      %s20 = sphi 0, %s27
      %s21 = sphi 0, %s19
      %s22 = sphi 0, %s20
      %s23 = sphi 0, %s21
      %s24 = sphi 0, %s22
      %s34 = sphi 0, %s36
      %s37 = sphi 0, %s34
      %s38 = sphi 0, %s37
      %s54 = sphi 0, %s38
      %s60 = sphi 0, %s62
      %s63 = sphi 0, %s60
      %s64 = sphi 0, %s63
      %s80 = sphi 0, %s64
      %s86 = sphi 0, %s88
      %s89 = sphi 0, %s86
      %s90 = sphi 0, %s89
      %s106 = sphi 0, %s90
      %s114 = sphi 0, %s116
      %s117 = sphi 0, %s114
      %s118 = sphi 0, %s117
      %s134 = sphi 0, %s118
    $region4: #{tpu_custom_call.1} parent=1 // loop_header_branch
      %15 = sbr.rel (%p13) target = $region8
    $region5: #{tpu_custom_call.1} parent=1 // loop_body
      %s17 = ssub.s32 %s12, 1
      %s18 = ssub.s32 %s12, 2
      %s25 = sadd.s32 1, %s20
      %p26 = scmp.ge.s32.totalorder %s25, 1
      %s27 = scalar_select %p26, 0, %s25
      %s28 = sadd.s32 1, %s19
      %s29 = scalar_select %p26, %s28, %s19
      %p30 = scmp.ge.s32.totalorder %s29, 2
      %s31 = scalar_select %p30, 0, %s29
      %s32 = ssub.s32 %s19, %s31
      %p33 = scmp.eq.s32.totalorder %s32, 0
      %s35 = sadd.s32 %s34, 1
      %s36 = scalar_select %p33, %s34, %s35
      %p39 = pneg %p33
      %p40 = scmp.eq.s32.totalorder %s12, 1
      %p41 = por %p39, %p40
      %p42 = scmp.ne.s32.totalorder %s34, %s37
      %p43 = scmp.eq.s32.totalorder %s12, 0
      %p44 = por %p42, %p43
      %p45 = scmp.ne.s32.totalorder %s34, %s37
      %p46 = scmp.eq.s32.totalorder %s17, 1
      %p47 = por %p45, %p46
      %p48 = scmp.ne.s32.totalorder %s37, %s38
      %p49 = scmp.eq.s32.totalorder %s17, 0
      %p50 = por %p48, %p49
      %p51 = scmp.ne.s32.totalorder %s37, %s38
      %p52 = scmp.eq.s32.totalorder %s18, 1
      %p53 = por %p51, %p52
      %p55 = scmp.ne.s32.totalorder %s38, %s54
      %p56 = scmp.eq.s32.totalorder %s18, 0
      %p57 = por %p55, %p56
      %s58 = ssub.s32 %s20, %s27
      %p59 = scmp.eq.s32.totalorder %s58, 0
      %s61 = sadd.s32 %s60, 1
      %s62 = scalar_select %p59, %s60, %s61
      %p65 = pneg %p59
      %p66 = scmp.eq.s32.totalorder %s12, 1
      %p67 = por %p65, %p66
      %p68 = scmp.ne.s32.totalorder %s60, %s63
      %p69 = scmp.eq.s32.totalorder %s12, 0
      %p70 = por %p68, %p69
      %p71 = scmp.ne.s32.totalorder %s60, %s63
      %p72 = scmp.eq.s32.totalorder %s17, 1
      %p73 = por %p71, %p72
      %p74 = scmp.ne.s32.totalorder %s63, %s64
      %p75 = scmp.eq.s32.totalorder %s17, 0
      %p76 = por %p74, %p75
      %p77 = scmp.ne.s32.totalorder %s63, %s64
      %p78 = scmp.eq.s32.totalorder %s18, 1
      %p79 = por %p77, %p78
      %p81 = scmp.ne.s32.totalorder %s64, %s80
      %p82 = scmp.eq.s32.totalorder %s18, 0
      %p83 = por %p81, %p82
      %s84 = ssub.s32 %s20, %s27
      %p85 = scmp.eq.s32.totalorder %s84, 0
      %s87 = sadd.s32 %s86, 1
      %s88 = scalar_select %p85, %s86, %s87
      %p91 = pneg %p85
      %p92 = scmp.eq.s32.totalorder %s12, 1
      %p93 = por %p91, %p92
      %p94 = scmp.ne.s32.totalorder %s86, %s89
      %p95 = scmp.eq.s32.totalorder %s12, 0
      %p96 = por %p94, %p95
      %p97 = scmp.ne.s32.totalorder %s86, %s89
      %p98 = scmp.eq.s32.totalorder %s17, 1
      %p99 = por %p97, %p98
      %p100 = scmp.ne.s32.totalorder %s89, %s90
      %p101 = scmp.eq.s32.totalorder %s17, 0
      %p102 = por %p100, %p101
      %p103 = scmp.ne.s32.totalorder %s89, %s90
      %p104 = scmp.eq.s32.totalorder %s18, 1
      %p105 = por %p103, %p104
      %p107 = scmp.ne.s32.totalorder %s90, %s106
      %p108 = scmp.eq.s32.totalorder %s18, 0
      %p109 = por %p107, %p108
      %s110 = ssub.s32 %s19, %s31
      %s111 = ssub.s32 %s20, %s27
      %s112 = sor.u32 %s110, %s111
      %p113 = scmp.eq.s32.totalorder %s112, 0
      %s115 = sadd.s32 %s114, 1
      %s116 = scalar_select %p113, %s114, %s115
      %p119 = pneg %p113
      %p120 = scmp.eq.s32.totalorder %s12, 1
      %p121 = por %p119, %p120
      %p122 = scmp.ne.s32.totalorder %s114, %s117
      %p123 = scmp.eq.s32.totalorder %s12, 0
      %p124 = por %p122, %p123
      %p125 = scmp.ne.s32.totalorder %s114, %s117
      %p126 = scmp.eq.s32.totalorder %s17, 1
      %p127 = por %p125, %p126
      %p128 = scmp.ne.s32.totalorder %s117, %s118
      %p129 = scmp.eq.s32.totalorder %s17, 0
      %p130 = por %p128, %p129
      %p131 = scmp.ne.s32.totalorder %s117, %s118
      %p132 = scmp.eq.s32.totalorder %s18, 1
      %p133 = por %p131, %p132
      %p135 = scmp.ne.s32.totalorder %s118, %s134
      %p136 = scmp.eq.s32.totalorder %s18, 0
      %p137 = por %p135, %p136
      %p138 = scmp.le.s32.totalorder 1, %s12
      %p139 = scmp.lt.s32.totalorder %s12, 3
      %p140 = pnand %p138, %p139
      %p141 = pneg %p140
      // Predicated region
      $region9: #{tpu_custom_call.1} parent=5 // pred_check
        _
      $region10: #{tpu_custom_call.1} parent=5 // pred_check_branch
        %143 = sbr.rel (%p140) target = $region12
      $region11: #{tpu_custom_call.1} parent=5 // pred_region
        %s144 = ssub.s32 %s12, 1
        // Predicated region
        $region13: #{tpu_custom_call.1} parent=11 // pred_check
          %p145 = pneg %p76
        $region14: #{tpu_custom_call.1} parent=11 // pred_check_branch
          %147 = sbr.rel (%p145) target = $region16
        $region15: #{tpu_custom_call.1} parent=11 // pred_region
          %p148 = scmp.lt.s32.totalorder %s22, 0
          %s149 = scalar_select %p148, %s22, 0
          %s150 = smul.addr %s149, 4
          %s151 = scalar_lea.vmem %s1, %s150
        $region16: #{tpu_custom_call.1} parent=11 // pred_fallthru
          _
        // Predicated region
        $region17: #{tpu_custom_call.1} parent=11 // pred_check
          %p152 = pneg %p102
        $region18: #{tpu_custom_call.1} parent=11 // pred_check_branch
          %154 = sbr.rel (%p152) target = $region20
        $region19: #{tpu_custom_call.1} parent=11 // pred_region
          %p155 = scmp.lt.s32.totalorder %s22, 0
          %s156 = scalar_select %p155, %s22, 0
          %s157 = scalar_lea.vmem %s2, %s156
        $region20: #{tpu_custom_call.1} parent=11 // pred_fallthru
          _
      $region12: #{tpu_custom_call.1} parent=5 // pred_fallthru
        _
      %p158 = scmp.lt.s32.totalorder %s12, 2
      // Predicated region
      $region21: #{tpu_custom_call.1} parent=5 // pred_check
        %p159 = pneg %p158
      $region22: #{tpu_custom_call.1} parent=5 // pred_check_branch
        %161 = sbr.rel (%p159) target = $region24
      $region23: #{tpu_custom_call.1} parent=5 // pred_region
        // Predicated region
        $region25: #{tpu_custom_call.1} parent=23 // pred_check
          %p162 = pneg %p44
        $region26: #{tpu_custom_call.1} parent=23 // pred_check_branch
          %164 = sbr.rel (%p162) target = $region28
        $region27: #{tpu_custom_call.1} parent=23 // pred_region
          %p165 = scmp.lt.s32.totalorder %s19, 1
          %s166 = scalar_select %p165, %s19, 1
          %s167 = smul.addr %s166, 54
          %s168 = smul.addr %s167, 4
          %s169 = scalar_lea.vmem %s0, %s168
        $region28: #{tpu_custom_call.1} parent=23 // pred_fallthru
          _
      $region24: #{tpu_custom_call.1} parent=5 // pred_fallthru
        _
      %p170 = scmp.le.s32.totalorder 1, %s12
      %p171 = scmp.lt.s32.totalorder %s12, 3
      %p172 = pnand %p170, %p171
      %p173 = pneg %p172
      // Predicated region
      $region29: #{tpu_custom_call.1} parent=5 // pred_check
        _
      $region30: #{tpu_custom_call.1} parent=5 // pred_check_branch
        %175 = sbr.rel (%p172) target = $region32
      $region31: #{tpu_custom_call.1} parent=5 // pred_region
        %s176 = ssub.s32 %s12, 1
        %p177 = scmp.lt.s32.totalorder %s21, 1
        %s178 = scalar_select %p177, %s21, 1
        %s179 = smul.addr %s178, 54
        %s180 = smul.addr %s179, 4
        %s181 = scalar_lea.vmem %s0, %s180
        %p182 = pneg %p50
        %p183 = pneg %p47
        %p184 = scmp.lt.s32.totalorder %s22, 0
        %s185 = scalar_select %p184, %s22, 0
        %s186 = smul.addr %s185, 4
        %s187 = scalar_lea.vmem %s1, %s186
        %p188 = pneg %p76
        %p189 = pneg %p73
        %p190 = scmp.lt.s32.totalorder %s22, 0
        %s191 = scalar_select %p190, %s22, 0
        %s192 = scalar_lea.vmem %s2, %s191
        %p193 = pneg %p102
        %p194 = pneg %p99
        %p195 = pneg %p130
        %p196 = pneg %p127
        %s197 = sand.u32 %s117, 1
        %s198 = scalar_lea.sflag [#allocation3], %s197
        %s199 = sand.u32 %s117, 1
        %s200 = smul.addr %s199, 128
        %s201 = scalar_lea.vmem [#allocation2], %s200
        %p202 = scmp.lt.s32.totalorder %s21, 1
        %s203 = scalar_select %p202, %s21, 1
        %s204 = smul.addr %s203, 54
        %s205 = smul.addr %s204, 4
        %s206 = scalar_lea.vmem %s0, %s205
        %p207 = scmp.lt.s32.totalorder %s22, 0
        %s208 = scalar_select %p207, %s22, 0
        %s209 = smul.addr %s208, 4
        %s210 = scalar_lea.vmem %s1, %s209
        %p211 = scmp.lt.s32.totalorder %s22, 0
        %s212 = scalar_select %p211, %s22, 0
        %s213 = scalar_lea.vmem %s2, %s212
        %v215 = vld [vmem:[%s210] sm:$0xf]
        %v216 = vld [vmem:[%s210 + $0x4] sm:$0xf]
        %v217 = vld [vmem:[%s210 + $0x8] sm:$0xf]
        %v218 = vld [vmem:[%s210 + $0xc] sm:$0xf]
        %v219 = vld [vmem:[%s210 + $0x10] sm:$0xf]
        %v220 = vld [vmem:[%s210 + $0x14] sm:$0xf]
        %v221 = vld [vmem:[%s210 + $0x18] sm:$0xf]
        %v222 = vld [vmem:[%s210 + $0x1c] sm:$0xf]
        %v223 = vld [vmem:[%s210 + $0x20] sm:$0xf]
        %v224 = vld [vmem:[%s210 + $0x24] sm:$0xf]
        %v225 = vld [vmem:[%s210 + $0x28] sm:$0xf]
        %v226 = vld [vmem:[%s210 + $0x2c] sm:$0xf]
        %v227 = vld [vmem:[%s210 + $0x30] sm:$0xf]
        %v228 = vld [vmem:[%s210 + $0x34] sm:$0xf]
        %v229 = vld [vmem:[%s210 + $0x38] sm:$0xf]
        %v230 = vld [vmem:[%s210 + $0x3c] sm:$0xf]
        %v231 = vld [vmem:[%s210 + $0x40] sm:$0xf]
        %v232 = vld [vmem:[%s210 + $0x44] sm:$0xf]
        %v233 = vld [vmem:[%s210 + $0x48] sm:$0xf]
        %v234 = vld [vmem:[%s210 + $0x4c] sm:$0xf]
        %v235 = vld [vmem:[%s210 + $0x50] sm:$0xf]
        %v236 = vld [vmem:[%s210 + $0x54] sm:$0xf]
        %v237 = vld [vmem:[%s210 + $0x58] sm:$0xf]
        %v238 = vld [vmem:[%s210 + $0x5c] sm:$0xf]
        %v239 = vld [vmem:[%s210 + $0x60] sm:$0xf]
        %v240 = vld [vmem:[%s210 + $0x64] sm:$0xf]
        %v241 = vld [vmem:[%s210 + $0x68] sm:$0xf]
        %v242 = vld [vmem:[%s210 + $0x6c] sm:$0xf]
        %v243 = vld [vmem:[%s210 + $0x70] sm:$0xf]
        %v244 = vld [vmem:[%s210 + $0x74] sm:$0xf]
        %v245 = vld [vmem:[%s210 + $0x78] sm:$0xf]
        %v246 = vld [vmem:[%s210 + $0x7c] sm:$0xf]
        %v247 = vld [vmem:[%s210 + $0x80] sm:$0xf]
        %v248 = vld [vmem:[%s210 + $0x84] sm:$0xf]
        %v249 = vld [vmem:[%s210 + $0x88] sm:$0xf]
        %v250 = vld [vmem:[%s210 + $0x8c] sm:$0xf]
        %v251 = vld [vmem:[%s210 + $0x90] sm:$0xf]
        %v252 = vld [vmem:[%s210 + $0x94] sm:$0xf]
        %v253 = vld [vmem:[%s210 + $0x98] sm:$0xf]
        %v254 = vld [vmem:[%s210 + $0x9c] sm:$0xf]
        %v255 = vld [vmem:[%s210 + $0xa0] sm:$0xf]
        %v256 = vld [vmem:[%s210 + $0xa4] sm:$0xf]
        %v257 = vld [vmem:[%s210 + $0xa8] sm:$0xf]
        %v258 = vld [vmem:[%s210 + $0xac] sm:$0xf]
        %v259 = vld [vmem:[%s210 + $0xb0] sm:$0xf]
        %v260 = vld [vmem:[%s210 + $0xb4] sm:$0xf]
        %v261 = vld [vmem:[%s210 + $0xb8] sm:$0xf]
        %v262 = vld [vmem:[%s210 + $0xbc] sm:$0xf]
        %v263 = vld [vmem:[%s210 + $0xc0] sm:$0xf]
        %v264 = vld [vmem:[%s210 + $0xc4] sm:$0xf]
        %v265 = vld [vmem:[%s210 + $0xc8] sm:$0xf]
        %v266 = vld [vmem:[%s210 + $0xcc] sm:$0xf]
        %v267 = vld [vmem:[%s210 + $0xd0] sm:$0xf]
        %v268 = vld [vmem:[%s210 + $0xd4] sm:$0xf]
        %v269 = vld [vmem:[%s210 + $0xd8] sm:$0xf]
        %v270 = vld [vmem:[%s210 + $0xdc] sm:$0xf]
        %v271 = vld [vmem:[%s210 + $0xe0] sm:$0xf]
        %v272 = vld [vmem:[%s210 + $0xe4] sm:$0xf]
        %v273 = vld [vmem:[%s210 + $0xe8] sm:$0xf]
        %v274 = vld [vmem:[%s210 + $0xec] sm:$0xf]
        %v275 = vld [vmem:[%s210 + $0xf0] sm:$0xf]
        %v276 = vld [vmem:[%s210 + $0xf4] sm:$0xf]
        %v277 = vld [vmem:[%s210 + $0xf8] sm:$0xf]
        %v278 = vld [vmem:[%s210 + $0xfc] sm:$0xf]
        %v279 = vld [vmem:[%s210 + $0x100] sm:$0xf]
        %v280 = vld [vmem:[%s210 + $0x104] sm:$0xf]
        %v281 = vld [vmem:[%s210 + $0x108] sm:$0xf]
        %v282 = vld [vmem:[%s210 + $0x10c] sm:$0xf]
        %v283 = vld [vmem:[%s210 + $0x110] sm:$0xf]
        %v284 = vld [vmem:[%s210 + $0x114] sm:$0xf]
        %v285 = vld [vmem:[%s210 + $0x118] sm:$0xf]
        %v286 = vld [vmem:[%s210 + $0x11c] sm:$0xf]
        %v287 = vld [vmem:[%s210 + $0x120] sm:$0xf]
        %v288 = vld [vmem:[%s210 + $0x124] sm:$0xf]
        %v289 = vld [vmem:[%s210 + $0x128] sm:$0xf]
        %v290 = vld [vmem:[%s210 + $0x12c] sm:$0xf]
        %v291 = vld [vmem:[%s210 + $0x130] sm:$0xf]
        %v292 = vld [vmem:[%s210 + $0x134] sm:$0xf]
        %v293 = vld [vmem:[%s210 + $0x138] sm:$0xf]
        %v294 = vld [vmem:[%s210 + $0x13c] sm:$0xf]
        %v295 = vld [vmem:[%s210 + $0x140] sm:$0xf]
        %v296 = vld [vmem:[%s210 + $0x144] sm:$0xf]
        %v297 = vld [vmem:[%s210 + $0x148] sm:$0xf]
        %v298 = vld [vmem:[%s210 + $0x14c] sm:$0xf]
        %v299 = vld [vmem:[%s210 + $0x150] sm:$0xf]
        %v300 = vld [vmem:[%s210 + $0x154] sm:$0xf]
        %v301 = vld [vmem:[%s210 + $0x158] sm:$0xf]
        %v302 = vld [vmem:[%s210 + $0x15c] sm:$0xf]
        %v303 = vld [vmem:[%s210 + $0x160] sm:$0xf]
        %v304 = vld [vmem:[%s210 + $0x164] sm:$0xf]
        %v305 = vld [vmem:[%s210 + $0x168] sm:$0xf]
        %v306 = vld [vmem:[%s210 + $0x16c] sm:$0xf]
        %v307 = vld [vmem:[%s210 + $0x170] sm:$0xf]
        %v308 = vld [vmem:[%s210 + $0x174] sm:$0xf]
        %v309 = vld [vmem:[%s210 + $0x178] sm:$0xf]
        %v310 = vld [vmem:[%s210 + $0x17c] sm:$0xf]
        %v311 = vld [vmem:[%s210 + $0x180] sm:$0xf]
        %v312 = vld [vmem:[%s210 + $0x184] sm:$0xf]
        %v313 = vld [vmem:[%s210 + $0x188] sm:$0xf]
        %v314 = vld [vmem:[%s210 + $0x18c] sm:$0xf]
        %v315 = vld [vmem:[%s210 + $0x190] sm:$0xf]
        %v316 = vld [vmem:[%s210 + $0x194] sm:$0xf]
        %v317 = vld [vmem:[%s210 + $0x198] sm:$0xf]
        %v318 = vld [vmem:[%s210 + $0x19c] sm:$0xf]
        %v319 = vld [vmem:[%s210 + $0x1a0] sm:$0xf]
        %v320 = vld [vmem:[%s210 + $0x1a4] sm:$0xf]
        %v321 = vld [vmem:[%s210 + $0x1a8] sm:$0xf]
        %v322 = vld [vmem:[%s210 + $0x1ac] sm:$0xf]
        %v323 = vld [vmem:[%s210 + $0x1b0] sm:$0xf]
        %v324 = vld [vmem:[%s210 + $0x1b4] sm:$0xf]
        %v325 = vld [vmem:[%s210 + $0x1b8] sm:$0xf]
        %v326 = vld [vmem:[%s210 + $0x1bc] sm:$0xf]
        %v327 = vld [vmem:[%s210 + $0x1c0] sm:$0xf]
        %v328 = vld [vmem:[%s210 + $0x1c4] sm:$0xf]
        %v329 = vld [vmem:[%s210 + $0x1c8] sm:$0xf]
        %v330 = vld [vmem:[%s210 + $0x1cc] sm:$0xf]
        %v331 = vld [vmem:[%s210 + $0x1d0] sm:$0xf]
        %v332 = vld [vmem:[%s210 + $0x1d4] sm:$0xf]
        %v333 = vld [vmem:[%s210 + $0x1d8] sm:$0xf]
        %v334 = vld [vmem:[%s210 + $0x1dc] sm:$0xf]
        %v335 = vld [vmem:[%s210 + $0x1e0] sm:$0xf]
        %v336 = vld [vmem:[%s210 + $0x1e4] sm:$0xf]
        %v337 = vld [vmem:[%s210 + $0x1e8] sm:$0xf]
        %v338 = vld [vmem:[%s210 + $0x1ec] sm:$0xf]
        %v339 = vld [vmem:[%s210 + $0x1f0] sm:$0xf]
        %v340 = vld [vmem:[%s210 + $0x1f4] sm:$0xf]
        %v341 = vld [vmem:[%s210 + $0x1f8] sm:$0xf]
        %v342 = vld [vmem:[%s210 + $0x1fc] sm:$0xf]
        %v343 = vld [vmem:[%s210 + $0x200] sm:$0xf]
        %v344 = vld [vmem:[%s210 + $0x204] sm:$0xf]
        %v345 = vld [vmem:[%s210 + $0x208] sm:$0xf]
        %v346 = vld [vmem:[%s210 + $0x20c] sm:$0xf]
        %v347 = vld [vmem:[%s210 + $0x210] sm:$0xf]
        %v348 = vld [vmem:[%s210 + $0x214] sm:$0xf]
        %v349 = vld [vmem:[%s210 + $0x218] sm:$0xf]
        %v350 = vld [vmem:[%s210 + $0x21c] sm:$0xf]
        %v351 = vld [vmem:[%s210 + $0x220] sm:$0xf]
        %v352 = vld [vmem:[%s210 + $0x224] sm:$0xf]
        %v353 = vld [vmem:[%s210 + $0x228] sm:$0xf]
        %v354 = vld [vmem:[%s210 + $0x22c] sm:$0xf]
        %v355 = vld [vmem:[%s210 + $0x230] sm:$0xf]
        %v356 = vld [vmem:[%s210 + $0x234] sm:$0xf]
        %v357 = vld [vmem:[%s210 + $0x238] sm:$0xf]
        %v358 = vld [vmem:[%s210 + $0x23c] sm:$0xf]
        %v359 = vld [vmem:[%s213] sm:$0x1]
        %v360 = vld [vmem:[%s206] sm:$0xf]
        %v361 = vld [vmem:[%s206 + $0x4] sm:$0xf]
        %v362 = vld [vmem:[%s206 + $0x8] sm:$0x1]
        %v363 = vld [vmem:[%s206 + $0xc] sm:$0xf]
        %v364 = vld [vmem:[%s206 + $0x10] sm:$0xf]
        %v365 = vld [vmem:[%s206 + $0x14] sm:$0x1]
        %v366 = vld [vmem:[%s206 + $0x18] sm:$0xf]
        %v367 = vld [vmem:[%s206 + $0x1c] sm:$0xf]
        %v368 = vld [vmem:[%s206 + $0x20] sm:$0x1]
        %v369 = vld [vmem:[%s206 + $0x24] sm:$0xf]
        %v370 = vld [vmem:[%s206 + $0x28] sm:$0xf]
        %v371 = vld [vmem:[%s206 + $0x2c] sm:$0x1]
        %v372 = vld [vmem:[%s206 + $0x30] sm:$0xf]
        %v373 = vld [vmem:[%s206 + $0x34] sm:$0xf]
        %v374 = vld [vmem:[%s206 + $0x38] sm:$0x1]
        %v375 = vld [vmem:[%s206 + $0x3c] sm:$0xf]
        %v376 = vld [vmem:[%s206 + $0x40] sm:$0xf]
        %v377 = vld [vmem:[%s206 + $0x44] sm:$0x1]
        %v378 = vld [vmem:[%s206 + $0x48] sm:$0xf]
        %v379 = vld [vmem:[%s206 + $0x4c] sm:$0xf]
        %v380 = vld [vmem:[%s206 + $0x50] sm:$0x1]
        %v381 = vld [vmem:[%s206 + $0x54] sm:$0xf]
        %v382 = vld [vmem:[%s206 + $0x58] sm:$0xf]
        %v383 = vld [vmem:[%s206 + $0x5c] sm:$0x1]
        %v384 = vld [vmem:[%s206 + $0x60] sm:$0xf]
        %v385 = vld [vmem:[%s206 + $0x64] sm:$0xf]
        %v386 = vld [vmem:[%s206 + $0x68] sm:$0x1]
        %v387 = vld [vmem:[%s206 + $0x6c] sm:$0xf]
        %v388 = vld [vmem:[%s206 + $0x70] sm:$0xf]
        %v389 = vld [vmem:[%s206 + $0x74] sm:$0x1]
        %v390 = vld [vmem:[%s206 + $0x78] sm:$0xf]
        %v391 = vld [vmem:[%s206 + $0x7c] sm:$0xf]
        %v392 = vld [vmem:[%s206 + $0x80] sm:$0x1]
        %v393 = vld [vmem:[%s206 + $0x84] sm:$0xf]
        %v394 = vld [vmem:[%s206 + $0x88] sm:$0xf]
        %v395 = vld [vmem:[%s206 + $0x8c] sm:$0x1]
        %v396 = vld [vmem:[%s206 + $0x90] sm:$0xf]
        %v397 = vld [vmem:[%s206 + $0x94] sm:$0xf]
        %v398 = vld [vmem:[%s206 + $0x98] sm:$0x1]
        %v399 = vld [vmem:[%s206 + $0x9c] sm:$0xf]
        %v400 = vld [vmem:[%s206 + $0xa0] sm:$0xf]
        %v401 = vld [vmem:[%s206 + $0xa4] sm:$0x1]
        %v402 = vld [vmem:[%s206 + $0xa8] sm:$0xf]
        %v403 = vld [vmem:[%s206 + $0xac] sm:$0xf]
        %v404 = vld [vmem:[%s206 + $0xb0] sm:$0x1]
        %v405 = vld [vmem:[%s206 + $0xb4] sm:$0xf]
        %v406 = vld [vmem:[%s206 + $0xb8] sm:$0xf]
        %v407 = vld [vmem:[%s206 + $0xbc] sm:$0x1]
        %v408 = vld [vmem:[%s206 + $0xc0] sm:$0xf]
        %v409 = vld [vmem:[%s206 + $0xc4] sm:$0xf]
        %v410 = vld [vmem:[%s206 + $0xc8] sm:$0x1]
        %v411 = vld [vmem:[%s206 + $0xcc] sm:$0xf]
        %v412 = vld [vmem:[%s206 + $0xd0] sm:$0xf]
        %v413 = vld [vmem:[%s206 + $0xd4] sm:$0x1]
        %vm414 = vsmask.f32 3328
        %vm415 = vsmask.f32 7440
        %vm416 = vmor %vm414, %vm415
        %v418 = vshrl.u32 %v360, 16
        %v420 = vrot.slane %v418, 4
        %v421 = vshll.u32 %v360, 16
        %v423 = vrot.slane %v421, 5
        %v424 = vor.u32 %v420, %v423
        %v425 = vrot.slane %v424, 4
        %v427 = vshll.u32 %v361, 16
        %v429 = vrot.slane %v427, 5
        %v430 = vsel %vm416, %v425, %v429
        %v431 = vshrl.u32 %v361, 16
        %v433 = vrot.slane %v431, 4
        %v434 = vor.u32 %v433, %v429
        %v435 = vrot.slane %v434, 4
        %v437 = vshll.u32 %v362, 16
        %v439 = vrot.slane %v437, 5
        %v440 = vsel %vm416, %v435, %v439
        %v442 = vshrl.u32 %v363, 16
        %v444 = vrot.slane %v442, 4
        %v445 = vshll.u32 %v363, 16
        %v447 = vrot.slane %v445, 5
        %v448 = vor.u32 %v444, %v447
        %v449 = vrot.slane %v448, 4
        %v451 = vshll.u32 %v364, 16
        %v453 = vrot.slane %v451, 5
        %v454 = vsel %vm416, %v449, %v453
        %v455 = vshrl.u32 %v364, 16
        %v457 = vrot.slane %v455, 4
        %v458 = vor.u32 %v457, %v453
        %v459 = vrot.slane %v458, 4
        %v461 = vshll.u32 %v365, 16
        %v463 = vrot.slane %v461, 5
        %v464 = vsel %vm416, %v459, %v463
        %v466 = vshrl.u32 %v366, 16
        %v468 = vrot.slane %v466, 4
        %v469 = vshll.u32 %v366, 16
        %v471 = vrot.slane %v469, 5
        %v472 = vor.u32 %v468, %v471
        %v473 = vrot.slane %v472, 4
        %v475 = vshll.u32 %v367, 16
        %v477 = vrot.slane %v475, 5
        %v478 = vsel %vm416, %v473, %v477
        %v479 = vshrl.u32 %v367, 16
        %v481 = vrot.slane %v479, 4
        %v482 = vor.u32 %v481, %v477
        %v483 = vrot.slane %v482, 4
        %v485 = vshll.u32 %v368, 16
        %v487 = vrot.slane %v485, 5
        %v488 = vsel %vm416, %v483, %v487
        %v490 = vshrl.u32 %v369, 16
        %v492 = vrot.slane %v490, 4
        %v493 = vshll.u32 %v369, 16
        %v495 = vrot.slane %v493, 5
        %v496 = vor.u32 %v492, %v495
        %v497 = vrot.slane %v496, 4
        %v499 = vshll.u32 %v370, 16
        %v501 = vrot.slane %v499, 5
        %v502 = vsel %vm416, %v497, %v501
        %v503 = vshrl.u32 %v370, 16
        %v505 = vrot.slane %v503, 4
        %v506 = vor.u32 %v505, %v501
        %v507 = vrot.slane %v506, 4
        %v509 = vshll.u32 %v371, 16
        %v511 = vrot.slane %v509, 5
        %v512 = vsel %vm416, %v507, %v511
        %v514 = vshrl.u32 %v372, 16
        %v516 = vrot.slane %v514, 4
        %v517 = vshll.u32 %v372, 16
        %v519 = vrot.slane %v517, 5
        %v520 = vor.u32 %v516, %v519
        %v521 = vrot.slane %v520, 4
        %v523 = vshll.u32 %v373, 16
        %v525 = vrot.slane %v523, 5
        %v526 = vsel %vm416, %v521, %v525
        %v527 = vshrl.u32 %v373, 16
        %v529 = vrot.slane %v527, 4
        %v530 = vor.u32 %v529, %v525
        %v531 = vrot.slane %v530, 4
        %v533 = vshll.u32 %v374, 16
        %v535 = vrot.slane %v533, 5
        %v536 = vsel %vm416, %v531, %v535
        %v538 = vshrl.u32 %v375, 16
        %v540 = vrot.slane %v538, 4
        %v541 = vshll.u32 %v375, 16
        %v543 = vrot.slane %v541, 5
        %v544 = vor.u32 %v540, %v543
        %v545 = vrot.slane %v544, 4
        %v547 = vshll.u32 %v376, 16
        %v549 = vrot.slane %v547, 5
        %v550 = vsel %vm416, %v545, %v549
        %v551 = vshrl.u32 %v376, 16
        %v553 = vrot.slane %v551, 4
        %v554 = vor.u32 %v553, %v549
        %v555 = vrot.slane %v554, 4
        %v557 = vshll.u32 %v377, 16
        %v559 = vrot.slane %v557, 5
        %v560 = vsel %vm416, %v555, %v559
        %v562 = vshrl.u32 %v378, 16
        %v564 = vrot.slane %v562, 4
        %v565 = vshll.u32 %v378, 16
        %v567 = vrot.slane %v565, 5
        %v568 = vor.u32 %v564, %v567
        %v569 = vrot.slane %v568, 4
        %v571 = vshll.u32 %v379, 16
        %v573 = vrot.slane %v571, 5
        %v574 = vsel %vm416, %v569, %v573
        %v575 = vshrl.u32 %v379, 16
        %v577 = vrot.slane %v575, 4
        %v578 = vor.u32 %v577, %v573
        %v579 = vrot.slane %v578, 4
        %v581 = vshll.u32 %v380, 16
        %v583 = vrot.slane %v581, 5
        %v584 = vsel %vm416, %v579, %v583
        %v586 = vshrl.u32 %v381, 16
        %v588 = vrot.slane %v586, 4
        %v589 = vshll.u32 %v381, 16
        %v591 = vrot.slane %v589, 5
        %v592 = vor.u32 %v588, %v591
        %v593 = vrot.slane %v592, 4
        %v595 = vshll.u32 %v382, 16
        %v597 = vrot.slane %v595, 5
        %v598 = vsel %vm416, %v593, %v597
        %v599 = vshrl.u32 %v382, 16
        %v601 = vrot.slane %v599, 4
        %v602 = vor.u32 %v601, %v597
        %v603 = vrot.slane %v602, 4
        %v605 = vshll.u32 %v383, 16
        %v607 = vrot.slane %v605, 5
        %v608 = vsel %vm416, %v603, %v607
        %v610 = vshrl.u32 %v384, 16
        %v612 = vrot.slane %v610, 4
        %v613 = vshll.u32 %v384, 16
        %v615 = vrot.slane %v613, 5
        %v616 = vor.u32 %v612, %v615
        %v617 = vrot.slane %v616, 4
        %v619 = vshll.u32 %v385, 16
        %v621 = vrot.slane %v619, 5
        %v622 = vsel %vm416, %v617, %v621
        %v623 = vshrl.u32 %v385, 16
        %v625 = vrot.slane %v623, 4
        %v626 = vor.u32 %v625, %v621
        %v627 = vrot.slane %v626, 4
        %v629 = vshll.u32 %v386, 16
        %v631 = vrot.slane %v629, 5
        %v632 = vsel %vm416, %v627, %v631
        %v634 = vshrl.u32 %v387, 16
        %v636 = vrot.slane %v634, 4
        %v637 = vshll.u32 %v387, 16
        %v639 = vrot.slane %v637, 5
        %v640 = vor.u32 %v636, %v639
        %v641 = vrot.slane %v640, 4
        %v643 = vshll.u32 %v388, 16
        %v645 = vrot.slane %v643, 5
        %v646 = vsel %vm416, %v641, %v645
        %v647 = vshrl.u32 %v388, 16
        %v649 = vrot.slane %v647, 4
        %v650 = vor.u32 %v649, %v645
        %v651 = vrot.slane %v650, 4
        %v653 = vshll.u32 %v389, 16
        %v655 = vrot.slane %v653, 5
        %v656 = vsel %vm416, %v651, %v655
        %v658 = vshrl.u32 %v390, 16
        %v660 = vrot.slane %v658, 4
        %v661 = vshll.u32 %v390, 16
        %v663 = vrot.slane %v661, 5
        %v664 = vor.u32 %v660, %v663
        %v665 = vrot.slane %v664, 4
        %v667 = vshll.u32 %v391, 16
        %v669 = vrot.slane %v667, 5
        %v670 = vsel %vm416, %v665, %v669
        %v671 = vshrl.u32 %v391, 16
        %v673 = vrot.slane %v671, 4
        %v674 = vor.u32 %v673, %v669
        %v675 = vrot.slane %v674, 4
        %v677 = vshll.u32 %v392, 16
        %v679 = vrot.slane %v677, 5
        %v680 = vsel %vm416, %v675, %v679
        %v682 = vshrl.u32 %v393, 16
        %v684 = vrot.slane %v682, 4
        %v685 = vshll.u32 %v393, 16
        %v687 = vrot.slane %v685, 5
        %v688 = vor.u32 %v684, %v687
        %v689 = vrot.slane %v688, 4
        %v691 = vshll.u32 %v394, 16
        %v693 = vrot.slane %v691, 5
        %v694 = vsel %vm416, %v689, %v693
        %v695 = vshrl.u32 %v394, 16
        %v697 = vrot.slane %v695, 4
        %v698 = vor.u32 %v697, %v693
        %v699 = vrot.slane %v698, 4
        %v701 = vshll.u32 %v395, 16
        %v703 = vrot.slane %v701, 5
        %v704 = vsel %vm416, %v699, %v703
        %v706 = vshrl.u32 %v396, 16
        %v708 = vrot.slane %v706, 4
        %v709 = vshll.u32 %v396, 16
        %v711 = vrot.slane %v709, 5
        %v712 = vor.u32 %v708, %v711
        %v713 = vrot.slane %v712, 4
        %v715 = vshll.u32 %v397, 16
        %v717 = vrot.slane %v715, 5
        %v718 = vsel %vm416, %v713, %v717
        %v719 = vshrl.u32 %v397, 16
        %v721 = vrot.slane %v719, 4
        %v722 = vor.u32 %v721, %v717
        %v723 = vrot.slane %v722, 4
        %v725 = vshll.u32 %v398, 16
        %v727 = vrot.slane %v725, 5
        %v728 = vsel %vm416, %v723, %v727
        %v730 = vshrl.u32 %v399, 16
        %v732 = vrot.slane %v730, 4
        %v733 = vshll.u32 %v399, 16
        %v735 = vrot.slane %v733, 5
        %v736 = vor.u32 %v732, %v735
        %v737 = vrot.slane %v736, 4
        %v739 = vshll.u32 %v400, 16
        %v741 = vrot.slane %v739, 5
        %v742 = vsel %vm416, %v737, %v741
        %v743 = vshrl.u32 %v400, 16
        %v745 = vrot.slane %v743, 4
        %v746 = vor.u32 %v745, %v741
        %v747 = vrot.slane %v746, 4
        %v749 = vshll.u32 %v401, 16
        %v751 = vrot.slane %v749, 5
        %v752 = vsel %vm416, %v747, %v751
        %v754 = vshrl.u32 %v402, 16
        %v756 = vrot.slane %v754, 4
        %v757 = vshll.u32 %v402, 16
        %v759 = vrot.slane %v757, 5
        %v760 = vor.u32 %v756, %v759
        %v761 = vrot.slane %v760, 4
        %v763 = vshll.u32 %v403, 16
        %v765 = vrot.slane %v763, 5
        %v766 = vsel %vm416, %v761, %v765
        %v767 = vshrl.u32 %v403, 16
        %v769 = vrot.slane %v767, 4
        %v770 = vor.u32 %v769, %v765
        %v771 = vrot.slane %v770, 4
        %v773 = vshll.u32 %v404, 16
        %v775 = vrot.slane %v773, 5
        %v776 = vsel %vm416, %v771, %v775
        %v778 = vshrl.u32 %v405, 16
        %v780 = vrot.slane %v778, 4
        %v781 = vshll.u32 %v405, 16
        %v783 = vrot.slane %v781, 5
        %v784 = vor.u32 %v780, %v783
        %v785 = vrot.slane %v784, 4
        %v787 = vshll.u32 %v406, 16
        %v789 = vrot.slane %v787, 5
        %v790 = vsel %vm416, %v785, %v789
        %v791 = vshrl.u32 %v406, 16
        %v793 = vrot.slane %v791, 4
        %v794 = vor.u32 %v793, %v789
        %v795 = vrot.slane %v794, 4
        %v797 = vshll.u32 %v407, 16
        %v799 = vrot.slane %v797, 5
        %v800 = vsel %vm416, %v795, %v799
        %vm849 = vcmask 1042432
        %vm850 = vcmask 1046532
        %vm851 = vmor %vm849, %vm850
        %v852 = vrot.slane %v360, 5
        %v853 = vrot.slane %v852, 4
        %v854 = vrot.slane %v361, 5
        %v855 = vsel %vm851, %v853, %v854
        %v856 = vrot.slane %v854, 4
        %v857 = vrot.slane %v362, 5
        %v858 = vsel %vm851, %v856, %v857
        %v859 = vrot.slane %v363, 5
        %v860 = vrot.slane %v859, 4
        %v861 = vrot.slane %v364, 5
        %v862 = vsel %vm851, %v860, %v861
        %v863 = vrot.slane %v861, 4
        %v864 = vrot.slane %v365, 5
        %v865 = vsel %vm851, %v863, %v864
        %v866 = vrot.slane %v366, 5
        %v867 = vrot.slane %v866, 4
        %v868 = vrot.slane %v367, 5
        %v869 = vsel %vm851, %v867, %v868
        %v870 = vrot.slane %v868, 4
        %v871 = vrot.slane %v368, 5
        %v872 = vsel %vm851, %v870, %v871
        %v873 = vrot.slane %v369, 5
        %v874 = vrot.slane %v873, 4
        %v875 = vrot.slane %v370, 5
        %v876 = vsel %vm851, %v874, %v875
        %v877 = vrot.slane %v875, 4
        %v878 = vrot.slane %v371, 5
        %v879 = vsel %vm851, %v877, %v878
        %v880 = vrot.slane %v372, 5
        %v881 = vrot.slane %v880, 4
        %v882 = vrot.slane %v373, 5
        %v883 = vsel %vm851, %v881, %v882
        %v884 = vrot.slane %v882, 4
        %v885 = vrot.slane %v374, 5
        %v886 = vsel %vm851, %v884, %v885
        %v887 = vrot.slane %v375, 5
        %v888 = vrot.slane %v887, 4
        %v889 = vrot.slane %v376, 5
        %v890 = vsel %vm851, %v888, %v889
        %v891 = vrot.slane %v889, 4
        %v892 = vrot.slane %v377, 5
        %v893 = vsel %vm851, %v891, %v892
        %v894 = vrot.slane %v378, 5
        %v895 = vrot.slane %v894, 4
        %v896 = vrot.slane %v379, 5
        %v897 = vsel %vm851, %v895, %v896
        %v898 = vrot.slane %v896, 4
        %v899 = vrot.slane %v380, 5
        %v900 = vsel %vm851, %v898, %v899
        %v901 = vrot.slane %v381, 5
        %v902 = vrot.slane %v901, 4
        %v903 = vrot.slane %v382, 5
        %v904 = vsel %vm851, %v902, %v903
        %v905 = vrot.slane %v903, 4
        %v906 = vrot.slane %v383, 5
        %v907 = vsel %vm851, %v905, %v906
        %v908 = vrot.slane %v384, 5
        %v909 = vrot.slane %v908, 4
        %v910 = vrot.slane %v385, 5
        %v911 = vsel %vm851, %v909, %v910
        %v912 = vrot.slane %v910, 4
        %v913 = vrot.slane %v386, 5
        %v914 = vsel %vm851, %v912, %v913
        %v915 = vrot.slane %v387, 5
        %v916 = vrot.slane %v915, 4
        %v917 = vrot.slane %v388, 5
        %v918 = vsel %vm851, %v916, %v917
        %v919 = vrot.slane %v917, 4
        %v920 = vrot.slane %v389, 5
        %v921 = vsel %vm851, %v919, %v920
        %v922 = vrot.slane %v390, 5
        %v923 = vrot.slane %v922, 4
        %v924 = vrot.slane %v391, 5
        %v925 = vsel %vm851, %v923, %v924
        %v926 = vrot.slane %v924, 4
        %v927 = vrot.slane %v392, 5
        %v928 = vsel %vm851, %v926, %v927
        %v929 = vrot.slane %v393, 5
        %v930 = vrot.slane %v929, 4
        %v931 = vrot.slane %v394, 5
        %v932 = vsel %vm851, %v930, %v931
        %v933 = vrot.slane %v931, 4
        %v934 = vrot.slane %v395, 5
        %v935 = vsel %vm851, %v933, %v934
        %v936 = vrot.slane %v396, 5
        %v937 = vrot.slane %v936, 4
        %v938 = vrot.slane %v397, 5
        %v939 = vsel %vm851, %v937, %v938
        %v940 = vrot.slane %v938, 4
        %v941 = vrot.slane %v398, 5
        %v942 = vsel %vm851, %v940, %v941
        %v943 = vrot.slane %v399, 5
        %v944 = vrot.slane %v943, 4
        %v945 = vrot.slane %v400, 5
        %v946 = vsel %vm851, %v944, %v945
        %v947 = vrot.slane %v945, 4
        %v948 = vrot.slane %v401, 5
        %v949 = vsel %vm851, %v947, %v948
        %v950 = vrot.slane %v402, 5
        %v951 = vrot.slane %v950, 4
        %v952 = vrot.slane %v403, 5
        %v953 = vsel %vm851, %v951, %v952
        %v954 = vrot.slane %v952, 4
        %v955 = vrot.slane %v404, 5
        %v956 = vsel %vm851, %v954, %v955
        %v957 = vrot.slane %v405, 5
        %v958 = vrot.slane %v957, 4
        %v959 = vrot.slane %v406, 5
        %v960 = vsel %vm851, %v958, %v959
        %v961 = vrot.slane %v959, 4
        %v962 = vrot.slane %v407, 5
        %v963 = vsel %vm851, %v961, %v962
        %v965 = vshrl.u32 %v408, 16
        %v967 = vrot.slane %v965, 4
        %v968 = vshll.u32 %v408, 16
        %v970 = vrot.slane %v968, 5
        %v971 = vor.u32 %v967, %v970
        %v972 = vrot.slane %v971, 4
        %v974 = vshll.u32 %v409, 16
        %v976 = vrot.slane %v974, 5
        %v977 = vsel %vm416, %v972, %v976
        %v978 = vshrl.u32 %v409, 16
        %v980 = vrot.slane %v978, 4
        %v981 = vor.u32 %v980, %v976
        %v982 = vrot.slane %v981, 4
        %v984 = vshll.u32 %v410, 16
        %v986 = vrot.slane %v984, 5
        %v987 = vsel %vm416, %v982, %v986
        %v991 = vrot.slane %v408, 5
        %v992 = vrot.slane %v991, 4
        %v993 = vrot.slane %v409, 5
        %v994 = vsel %vm851, %v992, %v993
        %v995 = vrot.slane %v993, 4
        %v996 = vrot.slane %v410, 5
        %v997 = vsel %vm851, %v995, %v996
        %v999 = vshrl.u32 %v411, 16
        %v1001 = vrot.slane %v999, 4
        %v1002 = vshll.u32 %v411, 16
        %v1004 = vrot.slane %v1002, 5
        %v1005 = vor.u32 %v1001, %v1004
        %v1006 = vrot.slane %v1005, 4
        %v1008 = vshll.u32 %v412, 16
        %v1010 = vrot.slane %v1008, 5
        %v1011 = vsel %vm416, %v1006, %v1010
        %v1012 = vshrl.u32 %v412, 16
        %v1014 = vrot.slane %v1012, 4
        %v1015 = vor.u32 %v1014, %v1010
        %v1016 = vrot.slane %v1015, 4
        %v1018 = vshll.u32 %v413, 16
        %v1020 = vrot.slane %v1018, 5
        %v1021 = vsel %vm416, %v1016, %v1020
        %v1025 = vrot.slane %v411, 5
        %v1026 = vrot.slane %v1025, 4
        %v1027 = vrot.slane %v412, 5
        %v1028 = vsel %vm851, %v1026, %v1027
        %v1029 = vrot.slane %v1027, 4
        %v1030 = vrot.slane %v413, 5
        %v1031 = vsel %vm851, %v1029, %v1030
        %v1032 = vunpack.c.l.b16 %v360
        %v1033 = vunpack.c.l.b16 %v361
        %v1034 = vunpack.c.l.b16 %v363
        %v1035 = vunpack.c.l.b16 %v364
        %v1036 = vunpack.c.l.b16 %v366
        %v1037 = vunpack.c.l.b16 %v367
        %v1038 = vunpack.c.l.b16 %v369
        %v1039 = vunpack.c.l.b16 %v370
        %v1040 = vunpack.c.l.b16 %v372
        %v1041 = vunpack.c.l.b16 %v373
        %v1042 = vunpack.c.l.b16 %v375
        %v1043 = vunpack.c.l.b16 %v376
        %v1044 = vunpack.c.l.b16 %v378
        %v1045 = vunpack.c.l.b16 %v379
        %v1046 = vunpack.c.l.b16 %v381
        %v1047 = vunpack.c.l.b16 %v382
        %v1048 = vunpack.c.l.b16 %v384
        %v1049 = vunpack.c.l.b16 %v385
        %v1050 = vunpack.c.l.b16 %v387
        %v1051 = vunpack.c.l.b16 %v388
        %v1052 = vunpack.c.l.b16 %v390
        %v1053 = vunpack.c.l.b16 %v391
        %v1054 = vunpack.c.l.b16 %v393
        %v1055 = vunpack.c.l.b16 %v394
        %v1056 = vunpack.c.l.b16 %v396
        %v1057 = vunpack.c.l.b16 %v397
        %v1058 = vunpack.c.l.b16 %v399
        %v1059 = vunpack.c.l.b16 %v400
        %v1060 = vunpack.c.l.b16 %v402
        %v1061 = vunpack.c.l.b16 %v403
        %v1062 = vunpack.c.l.b16 %v405
        %v1063 = vunpack.c.l.b16 %v406
        %v1064 = vpack.c.b16 %v1033, %v1032
        %v1065 = vpack.c.b16 %v1035, %v1034
        %v1066 = vpack.c.b16 %v1037, %v1036
        %v1067 = vpack.c.b16 %v1039, %v1038
        %v1068 = vpack.c.b16 %v1041, %v1040
        %v1069 = vpack.c.b16 %v1043, %v1042
        %v1070 = vpack.c.b16 %v1045, %v1044
        %v1071 = vpack.c.b16 %v1047, %v1046
        %v1072 = vpack.c.b16 %v1049, %v1048
        %v1073 = vpack.c.b16 %v1051, %v1050
        %v1074 = vpack.c.b16 %v1053, %v1052
        %v1075 = vpack.c.b16 %v1055, %v1054
        %v1076 = vpack.c.b16 %v1057, %v1056
        %v1077 = vpack.c.b16 %v1059, %v1058
        %v1078 = vpack.c.b16 %v1061, %v1060
        %v1079 = vpack.c.b16 %v1063, %v1062
        %v1096 = vunpack.c.l.b16 %v430
        %v1097 = vunpack.c.l.b16 %v440
        %v1098 = vunpack.c.l.b16 %v454
        %v1099 = vunpack.c.l.b16 %v464
        %v1100 = vunpack.c.l.b16 %v478
        %v1101 = vunpack.c.l.b16 %v488
        %v1102 = vunpack.c.l.b16 %v502
        %v1103 = vunpack.c.l.b16 %v512
        %v1104 = vunpack.c.l.b16 %v526
        %v1105 = vunpack.c.l.b16 %v536
        %v1106 = vunpack.c.l.b16 %v550
        %v1107 = vunpack.c.l.b16 %v560
        %v1108 = vunpack.c.l.b16 %v574
        %v1109 = vunpack.c.l.b16 %v584
        %v1110 = vunpack.c.l.b16 %v598
        %v1111 = vunpack.c.l.b16 %v608
        %v1112 = vunpack.c.l.b16 %v622
        %v1113 = vunpack.c.l.b16 %v632
        %v1114 = vunpack.c.l.b16 %v646
        %v1115 = vunpack.c.l.b16 %v656
        %v1116 = vunpack.c.l.b16 %v670
        %v1117 = vunpack.c.l.b16 %v680
        %v1118 = vunpack.c.l.b16 %v694
        %v1119 = vunpack.c.l.b16 %v704
        %v1120 = vunpack.c.l.b16 %v718
        %v1121 = vunpack.c.l.b16 %v728
        %v1122 = vunpack.c.l.b16 %v742
        %v1123 = vunpack.c.l.b16 %v752
        %v1124 = vunpack.c.l.b16 %v766
        %v1125 = vunpack.c.l.b16 %v776
        %v1126 = vunpack.c.l.b16 %v790
        %v1127 = vunpack.c.l.b16 %v800
        %v1128 = vpack.c.b16 %v1097, %v1096
        %v1129 = vpack.c.b16 %v1099, %v1098
        %v1130 = vpack.c.b16 %v1101, %v1100
        %v1131 = vpack.c.b16 %v1103, %v1102
        %v1132 = vpack.c.b16 %v1105, %v1104
        %v1133 = vpack.c.b16 %v1107, %v1106
        %v1134 = vpack.c.b16 %v1109, %v1108
        %v1135 = vpack.c.b16 %v1111, %v1110
        %v1136 = vpack.c.b16 %v1113, %v1112
        %v1137 = vpack.c.b16 %v1115, %v1114
        %v1138 = vpack.c.b16 %v1117, %v1116
        %v1139 = vpack.c.b16 %v1119, %v1118
        %v1140 = vpack.c.b16 %v1121, %v1120
        %v1141 = vpack.c.b16 %v1123, %v1122
        %v1142 = vpack.c.b16 %v1125, %v1124
        %v1143 = vpack.c.b16 %v1127, %v1126
        %v1160 = vunpack.c.l.b16 %v855
        %v1161 = vunpack.c.l.b16 %v858
        %v1162 = vunpack.c.l.b16 %v862
        %v1163 = vunpack.c.l.b16 %v865
        %v1164 = vunpack.c.l.b16 %v869
        %v1165 = vunpack.c.l.b16 %v872
        %v1166 = vunpack.c.l.b16 %v876
        %v1167 = vunpack.c.l.b16 %v879
        %v1168 = vunpack.c.l.b16 %v883
        %v1169 = vunpack.c.l.b16 %v886
        %v1170 = vunpack.c.l.b16 %v890
        %v1171 = vunpack.c.l.b16 %v893
        %v1172 = vunpack.c.l.b16 %v897
        %v1173 = vunpack.c.l.b16 %v900
        %v1174 = vunpack.c.l.b16 %v904
        %v1175 = vunpack.c.l.b16 %v907
        %v1176 = vunpack.c.l.b16 %v911
        %v1177 = vunpack.c.l.b16 %v914
        %v1178 = vunpack.c.l.b16 %v918
        %v1179 = vunpack.c.l.b16 %v921
        %v1180 = vunpack.c.l.b16 %v925
        %v1181 = vunpack.c.l.b16 %v928
        %v1182 = vunpack.c.l.b16 %v932
        %v1183 = vunpack.c.l.b16 %v935
        %v1184 = vunpack.c.l.b16 %v939
        %v1185 = vunpack.c.l.b16 %v942
        %v1186 = vunpack.c.l.b16 %v946
        %v1187 = vunpack.c.l.b16 %v949
        %v1188 = vunpack.c.l.b16 %v953
        %v1189 = vunpack.c.l.b16 %v956
        %v1190 = vunpack.c.l.b16 %v960
        %v1191 = vunpack.c.l.b16 %v963
        %v1192 = vpack.c.b16 %v1161, %v1160
        %v1193 = vpack.c.b16 %v1163, %v1162
        %v1194 = vpack.c.b16 %v1165, %v1164
        %v1195 = vpack.c.b16 %v1167, %v1166
        %v1196 = vpack.c.b16 %v1169, %v1168
        %v1197 = vpack.c.b16 %v1171, %v1170
        %v1198 = vpack.c.b16 %v1173, %v1172
        %v1199 = vpack.c.b16 %v1175, %v1174
        %v1200 = vpack.c.b16 %v1177, %v1176
        %v1201 = vpack.c.b16 %v1179, %v1178
        %v1202 = vpack.c.b16 %v1181, %v1180
        %v1203 = vpack.c.b16 %v1183, %v1182
        %v1204 = vpack.c.b16 %v1185, %v1184
        %v1205 = vpack.c.b16 %v1187, %v1186
        %v1206 = vpack.c.b16 %v1189, %v1188
        %v1207 = vpack.c.b16 %v1191, %v1190
        %v1224 = vunpack.c.l.b16 %v408
        %v1225 = vunpack.c.l.b16 %v409
        %v1226 = vpack.c.b16 %v1225, %v1224
        %v1228 = vunpack.c.l.b16 %v977
        %v1229 = vunpack.c.l.b16 %v987
        %v1230 = vpack.c.b16 %v1229, %v1228
        %v1232 = vunpack.c.l.b16 %v994
        %v1233 = vunpack.c.l.b16 %v997
        %v1234 = vpack.c.b16 %v1233, %v1232
        %v1236 = vunpack.c.l.b16 %v411
        %v1237 = vunpack.c.l.b16 %v412
        %v1238 = vpack.c.b16 %v1237, %v1236
        %v1240 = vunpack.c.l.b16 %v1011
        %v1241 = vunpack.c.l.b16 %v1021
        %v1242 = vpack.c.b16 %v1241, %v1240
        %v1244 = vunpack.c.l.b16 %v1028
        %v1245 = vunpack.c.l.b16 %v1031
        %v1246 = vpack.c.b16 %v1245, %v1244
        %v1249 = vlaneseq
        %v1250 = vshrl.u32 %v1249, 7
        %v1251 = vsub.s32 0, %v1250
        %v1252 = vrot.slane %v359, %v1251
        %v1398 = vunpack.c.l.b16 %v215
        %v1399 = vunpack.c.l.b16 %v216
        %v1400 = vunpack.c.l.b16 %v217
        %v1401 = vunpack.c.l.b16 %v218
        %v1402 = vunpack.c.l.b16 %v219
        %v1403 = vunpack.c.l.b16 %v220
        %v1404 = vunpack.c.l.b16 %v221
        %v1405 = vunpack.c.l.b16 %v222
        %v1406 = vunpack.c.l.b16 %v223
        %v1407 = vunpack.c.l.b16 %v224
        %v1408 = vunpack.c.l.b16 %v225
        %v1409 = vunpack.c.l.b16 %v226
        %v1410 = vunpack.c.l.b16 %v227
        %v1411 = vunpack.c.l.b16 %v228
        %v1412 = vunpack.c.l.b16 %v229
        %v1413 = vunpack.c.l.b16 %v230
        %v1414 = vunpack.c.l.b16 %v231
        %v1415 = vunpack.c.l.b16 %v232
        %v1416 = vunpack.c.l.b16 %v233
        %v1417 = vunpack.c.l.b16 %v234
        %v1418 = vunpack.c.l.b16 %v235
        %v1419 = vunpack.c.l.b16 %v236
        %v1420 = vunpack.c.l.b16 %v237
        %v1421 = vunpack.c.l.b16 %v238
        %v1422 = vunpack.c.l.b16 %v239
        %v1423 = vunpack.c.l.b16 %v240
        %v1424 = vunpack.c.l.b16 %v241
        %v1425 = vunpack.c.l.b16 %v242
        %v1426 = vunpack.c.l.b16 %v243
        %v1427 = vunpack.c.l.b16 %v244
        %v1428 = vunpack.c.l.b16 %v245
        %v1429 = vunpack.c.l.b16 %v246
        %v1430 = vunpack.c.l.b16 %v247
        %v1431 = vunpack.c.l.b16 %v248
        %v1432 = vunpack.c.l.b16 %v249
        %v1433 = vunpack.c.l.b16 %v250
        %v1434 = vunpack.c.l.b16 %v251
        %v1435 = vunpack.c.l.b16 %v252
        %v1436 = vunpack.c.l.b16 %v253
        %v1437 = vunpack.c.l.b16 %v254
        %v1438 = vunpack.c.l.b16 %v255
        %v1439 = vunpack.c.l.b16 %v256
        %v1440 = vunpack.c.l.b16 %v257
        %v1441 = vunpack.c.l.b16 %v258
        %v1442 = vunpack.c.l.b16 %v259
        %v1443 = vunpack.c.l.b16 %v260
        %v1444 = vunpack.c.l.b16 %v261
        %v1445 = vunpack.c.l.b16 %v262
        %v1446 = vunpack.c.l.b16 %v263
        %v1447 = vunpack.c.l.b16 %v264
        %v1448 = vunpack.c.l.b16 %v265
        %v1449 = vunpack.c.l.b16 %v266
        %v1450 = vunpack.c.l.b16 %v267
        %v1451 = vunpack.c.l.b16 %v268
        %v1452 = vunpack.c.l.b16 %v269
        %v1453 = vunpack.c.l.b16 %v270
        %v1454 = vunpack.c.l.b16 %v271
        %v1455 = vunpack.c.l.b16 %v272
        %v1456 = vunpack.c.l.b16 %v273
        %v1457 = vunpack.c.l.b16 %v274
        %v1458 = vunpack.c.l.b16 %v275
        %v1459 = vunpack.c.l.b16 %v276
        %v1460 = vunpack.c.l.b16 %v277
        %v1461 = vunpack.c.l.b16 %v278
        %v1462 = vunpack.c.l.b16 %v279
        %v1463 = vunpack.c.l.b16 %v280
        %v1464 = vunpack.c.l.b16 %v281
        %v1465 = vunpack.c.l.b16 %v282
        %v1466 = vunpack.c.l.b16 %v283
        %v1467 = vunpack.c.l.b16 %v284
        %v1468 = vunpack.c.l.b16 %v285
        %v1469 = vunpack.c.l.b16 %v286
        %v1470 = vunpack.c.l.b16 %v287
        %v1471 = vunpack.c.l.b16 %v288
        %v1472 = vunpack.c.l.b16 %v289
        %v1473 = vunpack.c.l.b16 %v290
        %v1474 = vunpack.c.l.b16 %v291
        %v1475 = vunpack.c.l.b16 %v292
        %v1476 = vunpack.c.l.b16 %v293
        %v1477 = vunpack.c.l.b16 %v294
        %v1478 = vunpack.c.l.b16 %v295
        %v1479 = vunpack.c.l.b16 %v296
        %v1480 = vunpack.c.l.b16 %v297
        %v1481 = vunpack.c.l.b16 %v298
        %v1482 = vunpack.c.l.b16 %v299
        %v1483 = vunpack.c.l.b16 %v300
        %v1484 = vunpack.c.l.b16 %v301
        %v1485 = vunpack.c.l.b16 %v302
        %v1486 = vunpack.c.l.b16 %v303
        %v1487 = vunpack.c.l.b16 %v304
        %v1488 = vunpack.c.l.b16 %v305
        %v1489 = vunpack.c.l.b16 %v306
        %v1490 = vunpack.c.l.b16 %v307
        %v1491 = vunpack.c.l.b16 %v308
        %v1492 = vunpack.c.l.b16 %v309
        %v1493 = vunpack.c.l.b16 %v310
        %v1494 = vunpack.c.l.b16 %v311
        %v1495 = vunpack.c.l.b16 %v312
        %v1496 = vunpack.c.l.b16 %v313
        %v1497 = vunpack.c.l.b16 %v314
        %v1498 = vunpack.c.l.b16 %v315
        %v1499 = vunpack.c.l.b16 %v316
        %v1500 = vunpack.c.l.b16 %v317
        %v1501 = vunpack.c.l.b16 %v318
        %v1502 = vunpack.c.l.b16 %v319
        %v1503 = vunpack.c.l.b16 %v320
        %v1504 = vunpack.c.l.b16 %v321
        %v1505 = vunpack.c.l.b16 %v322
        %v1506 = vunpack.c.l.b16 %v323
        %v1507 = vunpack.c.l.b16 %v324
        %v1508 = vunpack.c.l.b16 %v325
        %v1509 = vunpack.c.l.b16 %v326
        %v1510 = vunpack.c.l.b16 %v327
        %v1511 = vunpack.c.l.b16 %v328
        %v1512 = vunpack.c.l.b16 %v329
        %v1513 = vunpack.c.l.b16 %v330
        %v1514 = vunpack.c.l.b16 %v331
        %v1515 = vunpack.c.l.b16 %v332
        %v1516 = vunpack.c.l.b16 %v333
        %v1517 = vunpack.c.l.b16 %v334
        %v1518 = vunpack.c.l.b16 %v335
        %v1519 = vunpack.c.l.b16 %v336
        %v1520 = vunpack.c.l.b16 %v337
        %v1521 = vunpack.c.l.b16 %v338
        %v1522 = vunpack.c.l.b16 %v339
        %v1523 = vunpack.c.l.b16 %v340
        %v1524 = vunpack.c.l.b16 %v341
        %v1525 = vunpack.c.l.b16 %v342
        %v1526 = vunpack.c.l.b16 %v343
        %v1527 = vunpack.c.l.b16 %v344
        %v1528 = vunpack.c.l.b16 %v345
        %v1529 = vunpack.c.l.b16 %v346
        %v1530 = vunpack.c.l.b16 %v347
        %v1531 = vunpack.c.l.b16 %v348
        %v1532 = vunpack.c.l.b16 %v349
        %v1533 = vunpack.c.l.b16 %v350
        %v1534 = vunpack.c.l.b16 %v351
        %v1535 = vunpack.c.l.b16 %v352
        %v1536 = vunpack.c.l.b16 %v353
        %v1537 = vunpack.c.l.b16 %v354
        %v1538 = vunpack.c.l.b16 %v355
        %v1539 = vunpack.c.l.b16 %v356
        %v1540 = vunpack.c.l.b16 %v357
        %v1541 = vunpack.c.l.b16 %v358
        %v1542 = vpack.c.b16 %v1399, %v1398
        %v1543 = vpack.c.b16 %v1401, %v1400
        %v1544 = vpack.c.b16 %v1403, %v1402
        %v1545 = vpack.c.b16 %v1405, %v1404
        %v1546 = vpack.c.b16 %v1407, %v1406
        %v1547 = vpack.c.b16 %v1409, %v1408
        %v1548 = vpack.c.b16 %v1411, %v1410
        %v1549 = vpack.c.b16 %v1413, %v1412
        %v1550 = vpack.c.b16 %v1415, %v1414
        %v1551 = vpack.c.b16 %v1417, %v1416
        %v1552 = vpack.c.b16 %v1419, %v1418
        %v1553 = vpack.c.b16 %v1421, %v1420
        %v1554 = vpack.c.b16 %v1423, %v1422
        %v1555 = vpack.c.b16 %v1425, %v1424
        %v1556 = vpack.c.b16 %v1427, %v1426
        %v1557 = vpack.c.b16 %v1429, %v1428
        %v1558 = vpack.c.b16 %v1431, %v1430
        %v1559 = vpack.c.b16 %v1433, %v1432
        %v1560 = vpack.c.b16 %v1435, %v1434
        %v1561 = vpack.c.b16 %v1437, %v1436
        %v1562 = vpack.c.b16 %v1439, %v1438
        %v1563 = vpack.c.b16 %v1441, %v1440
        %v1564 = vpack.c.b16 %v1443, %v1442
        %v1565 = vpack.c.b16 %v1445, %v1444
        %v1566 = vpack.c.b16 %v1447, %v1446
        %v1567 = vpack.c.b16 %v1449, %v1448
        %v1568 = vpack.c.b16 %v1451, %v1450
        %v1569 = vpack.c.b16 %v1453, %v1452
        %v1570 = vpack.c.b16 %v1455, %v1454
        %v1571 = vpack.c.b16 %v1457, %v1456
        %v1572 = vpack.c.b16 %v1459, %v1458
        %v1573 = vpack.c.b16 %v1461, %v1460
        %v1574 = vpack.c.b16 %v1463, %v1462
        %v1575 = vpack.c.b16 %v1465, %v1464
        %v1576 = vpack.c.b16 %v1467, %v1466
        %v1577 = vpack.c.b16 %v1469, %v1468
        %v1578 = vpack.c.b16 %v1471, %v1470
        %v1579 = vpack.c.b16 %v1473, %v1472
        %v1580 = vpack.c.b16 %v1475, %v1474
        %v1581 = vpack.c.b16 %v1477, %v1476
        %v1582 = vpack.c.b16 %v1479, %v1478
        %v1583 = vpack.c.b16 %v1481, %v1480
        %v1584 = vpack.c.b16 %v1483, %v1482
        %v1585 = vpack.c.b16 %v1485, %v1484
        %v1586 = vpack.c.b16 %v1487, %v1486
        %v1587 = vpack.c.b16 %v1489, %v1488
        %v1588 = vpack.c.b16 %v1491, %v1490
        %v1589 = vpack.c.b16 %v1493, %v1492
        %v1590 = vpack.c.b16 %v1495, %v1494
        %v1591 = vpack.c.b16 %v1497, %v1496
        %v1592 = vpack.c.b16 %v1499, %v1498
        %v1593 = vpack.c.b16 %v1501, %v1500
        %v1594 = vpack.c.b16 %v1503, %v1502
        %v1595 = vpack.c.b16 %v1505, %v1504
        %v1596 = vpack.c.b16 %v1507, %v1506
        %v1597 = vpack.c.b16 %v1509, %v1508
        %v1598 = vpack.c.b16 %v1511, %v1510
        %v1599 = vpack.c.b16 %v1513, %v1512
        %v1600 = vpack.c.b16 %v1515, %v1514
        %v1601 = vpack.c.b16 %v1517, %v1516
        %v1602 = vpack.c.b16 %v1519, %v1518
        %v1603 = vpack.c.b16 %v1521, %v1520
        %v1604 = vpack.c.b16 %v1523, %v1522
        %v1605 = vpack.c.b16 %v1525, %v1524
        %v1606 = vpack.c.b16 %v1527, %v1526
        %v1607 = vpack.c.b16 %v1529, %v1528
        %v1608 = vpack.c.b16 %v1531, %v1530
        %v1609 = vpack.c.b16 %v1533, %v1532
        %v1610 = vpack.c.b16 %v1535, %v1534
        %v1611 = vpack.c.b16 %v1537, %v1536
        %v1612 = vpack.c.b16 %v1539, %v1538
        %v1613 = vpack.c.b16 %v1541, %v1540
        %1686 = vmatprep.subr.bf16.mxu0 0
        %1687 = vmatpush1.bf16.msra.mxu0 %v1549
        %1688 = vmatprep.subr.bf16.mxu0 0
        %1689 = vmatpush1.bf16.msra.mxu0 %v1548
        %1690 = vmatprep.subr.bf16.mxu0 0
        %1691 = vmatpush1.bf16.msra.mxu0 %v1547
        %1692 = vmatprep.subr.bf16.mxu0 0
        %1693 = vmatpush1.bf16.msra.mxu0 %v1546
        %1694 = vmatprep.subr.bf16.mxu0 0
        %1695 = vmatpush1.bf16.msra.mxu0 %v1545
        %1696 = vmatprep.subr.bf16.mxu0 0
        %1697 = vmatpush1.bf16.msra.mxu0 %v1544
        %1698 = vmatprep.subr.bf16.mxu0 0
        %1699 = vmatpush1.bf16.msra.mxu0 %v1543
        %1700 = vmatprep.subr.bf16.mxu0 0
        %1701 = vmatpush1.bf16.msra.mxu0 %v1542
        %1702 = vmatprep.subr.bf16.mxu0 0
        %1703 = vmatpush2.bf16.msra.mxu0 %v1557
        %1704 = vmatprep.subr.bf16.mxu0 0
        %1705 = vmatpush2.bf16.msra.mxu0 %v1556
        %1706 = vmatprep.subr.bf16.mxu0 0
        %1707 = vmatpush2.bf16.msra.mxu0 %v1555
        %1708 = vmatprep.subr.bf16.mxu0 0
        %1709 = vmatpush2.bf16.msra.mxu0 %v1554
        %1710 = vmatprep.subr.bf16.mxu0 0
        %1711 = vmatpush2.bf16.msra.mxu0 %v1553
        %1712 = vmatprep.subr.bf16.mxu0 0
        %1713 = vmatpush2.bf16.msra.mxu0 %v1552
        %1714 = vmatprep.subr.bf16.mxu0 0
        %1715 = vmatpush2.bf16.msra.mxu0 %v1551
        %1716 = vmatprep.subr.bf16.mxu0 0
        %1717 = vmatpush2.bf16.msra.mxu0 %v1550
        %1718 = vmatprep.mubr.bf16.mxu0 %v1128
        %1719 = vmatmul.mubr.bf16.gmra.mxu0 %v1064
        %v1720 = vpop.f32.mrf.mxu0
        %v1721 = vadd.f32 %v1252, %v1720
        %v1722 = vpop.f32.mrf.mxu0
        %v1723 = vpop.f32.mrf.mxu0
        %v1724 = vadd.f32 %v1252, %v1723
        %v1725 = vpop.f32.mrf.mxu0
        %1726 = vmatprep.mubr.bf16.mxu0 %v1129
        %1727 = vmatmul.mubr.bf16.gmra.mxu0 %v1065
        %v1728 = vpop.f32.mrf.mxu0
        %v1729 = vadd.f32 %v1252, %v1728
        %v1730 = vpop.f32.mrf.mxu0
        %v1731 = vpop.f32.mrf.mxu0
        %v1732 = vadd.f32 %v1252, %v1731
        %v1733 = vpop.f32.mrf.mxu0
        %1734 = vmatprep.mubr.bf16.mxu0 %v1130
        %1735 = vmatmul.mubr.bf16.gmra.mxu0 %v1066
        %v1736 = vpop.f32.mrf.mxu0
        %v1737 = vadd.f32 %v1252, %v1736
        %v1738 = vpop.f32.mrf.mxu0
        %v1739 = vpop.f32.mrf.mxu0
        %v1740 = vadd.f32 %v1252, %v1739
        %v1741 = vpop.f32.mrf.mxu0
        %1742 = vmatprep.mubr.bf16.mxu0 %v1131
        %1743 = vmatmul.mubr.bf16.gmra.mxu0 %v1067
        %v1744 = vpop.f32.mrf.mxu0
        %v1745 = vadd.f32 %v1252, %v1744
        %v1746 = vpop.f32.mrf.mxu0
        %v1747 = vpop.f32.mrf.mxu0
        %v1748 = vadd.f32 %v1252, %v1747
        %v1749 = vpop.f32.mrf.mxu0
        %1750 = vmatprep.mubr.bf16.mxu0 %v1132
        %1751 = vmatmul.mubr.bf16.gmra.mxu0 %v1068
        %v1752 = vpop.f32.mrf.mxu0
        %v1753 = vadd.f32 %v1252, %v1752
        %v1754 = vpop.f32.mrf.mxu0
        %v1755 = vpop.f32.mrf.mxu0
        %v1756 = vadd.f32 %v1252, %v1755
        %v1757 = vpop.f32.mrf.mxu0
        %1758 = vmatprep.mubr.bf16.mxu0 %v1133
        %1759 = vmatmul.mubr.bf16.gmra.mxu0 %v1069
        %v1760 = vpop.f32.mrf.mxu0
        %v1761 = vadd.f32 %v1252, %v1760
        %v1762 = vpop.f32.mrf.mxu0
        %v1763 = vpop.f32.mrf.mxu0
        %v1764 = vadd.f32 %v1252, %v1763
        %v1765 = vpop.f32.mrf.mxu0
        %1766 = vmatprep.mubr.bf16.mxu0 %v1134
        %1767 = vmatmul.mubr.bf16.gmra.mxu0 %v1070
        %v1768 = vpop.f32.mrf.mxu0
        %v1769 = vadd.f32 %v1252, %v1768
        %v1770 = vpop.f32.mrf.mxu0
        %v1771 = vpop.f32.mrf.mxu0
        %v1772 = vadd.f32 %v1252, %v1771
        %v1773 = vpop.f32.mrf.mxu0
        %1774 = vmatprep.mubr.bf16.mxu0 %v1135
        %1775 = vmatmul.mubr.bf16.gmra.mxu0 %v1071
        %v1776 = vpop.f32.mrf.mxu0
        %v1777 = vadd.f32 %v1252, %v1776
        %v1778 = vpop.f32.mrf.mxu0
        %v1779 = vpop.f32.mrf.mxu0
        %v1780 = vadd.f32 %v1252, %v1779
        %v1781 = vpop.f32.mrf.mxu0
        %1782 = vmatprep.mubr.bf16.mxu0 %v1136
        %1783 = vmatmul.mubr.bf16.gmra.mxu0 %v1072
        %v1784 = vpop.f32.mrf.mxu0
        %v1785 = vadd.f32 %v1252, %v1784
        %v1786 = vpop.f32.mrf.mxu0
        %v1787 = vpop.f32.mrf.mxu0
        %v1788 = vadd.f32 %v1252, %v1787
        %v1789 = vpop.f32.mrf.mxu0
        %1790 = vmatprep.mubr.bf16.mxu0 %v1137
        %1791 = vmatmul.mubr.bf16.gmra.mxu0 %v1073
        %v1792 = vpop.f32.mrf.mxu0
        %v1793 = vadd.f32 %v1252, %v1792
        %v1794 = vpop.f32.mrf.mxu0
        %v1795 = vpop.f32.mrf.mxu0
        %v1796 = vadd.f32 %v1252, %v1795
        %v1797 = vpop.f32.mrf.mxu0
        %1798 = vmatprep.mubr.bf16.mxu0 %v1138
        %1799 = vmatmul.mubr.bf16.gmra.mxu0 %v1074
        %v1800 = vpop.f32.mrf.mxu0
        %v1801 = vadd.f32 %v1252, %v1800
        %v1802 = vpop.f32.mrf.mxu0
        %v1803 = vpop.f32.mrf.mxu0
        %v1804 = vadd.f32 %v1252, %v1803
        %v1805 = vpop.f32.mrf.mxu0
        %1806 = vmatprep.mubr.bf16.mxu0 %v1139
        %1807 = vmatmul.mubr.bf16.gmra.mxu0 %v1075
        %v1808 = vpop.f32.mrf.mxu0
        %v1809 = vadd.f32 %v1252, %v1808
        %v1810 = vpop.f32.mrf.mxu0
        %v1811 = vpop.f32.mrf.mxu0
        %v1812 = vadd.f32 %v1252, %v1811
        %v1813 = vpop.f32.mrf.mxu0
        %1814 = vmatprep.mubr.bf16.mxu0 %v1140
        %1815 = vmatmul.mubr.bf16.gmra.mxu0 %v1076
        %v1816 = vpop.f32.mrf.mxu0
        %v1817 = vadd.f32 %v1252, %v1816
        %v1818 = vpop.f32.mrf.mxu0
        %v1819 = vpop.f32.mrf.mxu0
        %v1820 = vadd.f32 %v1252, %v1819
        %v1821 = vpop.f32.mrf.mxu0
        %1822 = vmatprep.mubr.bf16.mxu0 %v1141
        %1823 = vmatmul.mubr.bf16.gmra.mxu0 %v1077
        %v1824 = vpop.f32.mrf.mxu0
        %v1825 = vadd.f32 %v1252, %v1824
        %v1826 = vpop.f32.mrf.mxu0
        %v1827 = vpop.f32.mrf.mxu0
        %v1828 = vadd.f32 %v1252, %v1827
        %v1829 = vpop.f32.mrf.mxu0
        %1830 = vmatprep.mubr.bf16.mxu0 %v1142
        %1831 = vmatmul.mubr.bf16.gmra.mxu0 %v1078
        %v1832 = vpop.f32.mrf.mxu0
        %v1833 = vadd.f32 %v1252, %v1832
        %v1834 = vpop.f32.mrf.mxu0
        %v1835 = vpop.f32.mrf.mxu0
        %v1836 = vadd.f32 %v1252, %v1835
        %v1837 = vpop.f32.mrf.mxu0
        %1838 = vmatprep.mubr.bf16.mxu0 %v1143
        %1839 = vmatmul.mubr.bf16.gmra.mxu0 %v1079
        %v1840 = vpop.f32.mrf.mxu0
        %v1841 = vadd.f32 %v1252, %v1840
        %v1842 = vpop.f32.mrf.mxu0
        %v1843 = vpop.f32.mrf.mxu0
        %v1844 = vadd.f32 %v1252, %v1843
        %v1845 = vpop.f32.mrf.mxu0
        %1846 = vdwg.mxu0
        %1847 = vmatprep.subr.bf16.mxu0 0
        %1848 = vmatpush1.bf16.msra.mxu0 %v1565
        %1849 = vmatprep.subr.bf16.mxu0 0
        %1850 = vmatpush1.bf16.msra.mxu0 %v1564
        %1851 = vmatprep.subr.bf16.mxu0 0
        %1852 = vmatpush1.bf16.msra.mxu0 %v1563
        %1853 = vmatprep.subr.bf16.mxu0 0
        %1854 = vmatpush1.bf16.msra.mxu0 %v1562
        %1855 = vmatprep.subr.bf16.mxu0 0
        %1856 = vmatpush1.bf16.msra.mxu0 %v1561
        %1857 = vmatprep.subr.bf16.mxu0 0
        %1858 = vmatpush1.bf16.msra.mxu0 %v1560
        %1859 = vmatprep.subr.bf16.mxu0 0
        %1860 = vmatpush1.bf16.msra.mxu0 %v1559
        %1861 = vmatprep.subr.bf16.mxu0 0
        %1862 = vmatpush1.bf16.msra.mxu0 %v1558
        %1863 = vmatprep.subr.bf16.mxu0 0
        %1864 = vmatpush2.bf16.msra.mxu0 %v1573
        %1865 = vmatprep.subr.bf16.mxu0 0
        %1866 = vmatpush2.bf16.msra.mxu0 %v1572
        %1867 = vmatprep.subr.bf16.mxu0 0
        %1868 = vmatpush2.bf16.msra.mxu0 %v1571
        %1869 = vmatprep.subr.bf16.mxu0 0
        %1870 = vmatpush2.bf16.msra.mxu0 %v1570
        %1871 = vmatprep.subr.bf16.mxu0 0
        %1872 = vmatpush2.bf16.msra.mxu0 %v1569
        %1873 = vmatprep.subr.bf16.mxu0 0
        %1874 = vmatpush2.bf16.msra.mxu0 %v1568
        %1875 = vmatprep.subr.bf16.mxu0 0
        %1876 = vmatpush2.bf16.msra.mxu0 %v1567
        %1877 = vmatprep.subr.bf16.mxu0 0
        %1878 = vmatpush2.bf16.msra.mxu0 %v1566
        %1879 = vmatprep.mubr.bf16.mxu0 %v1065
        %1880 = vmatmul.mubr.bf16.gmra.mxu0 %v1192
        %v1881 = vpop.f32.mrf.mxu0
        %v1882 = vadd.f32 %v1721, %v1881
        %v1883 = vpop.f32.mrf.mxu0
        %v1884 = vpop.f32.mrf.mxu0
        %v1885 = vadd.f32 %v1724, %v1884
        %v1886 = vpop.f32.mrf.mxu0
        %1887 = vmatprep.mubr.bf16.mxu0 %v1066
        %1888 = vmatmul.mubr.bf16.gmra.mxu0 %v1193
        %v1889 = vpop.f32.mrf.mxu0
        %v1890 = vadd.f32 %v1729, %v1889
        %v1891 = vpop.f32.mrf.mxu0
        %v1892 = vpop.f32.mrf.mxu0
        %v1893 = vadd.f32 %v1732, %v1892
        %v1894 = vpop.f32.mrf.mxu0
        %1895 = vmatprep.mubr.bf16.mxu0 %v1067
        %1896 = vmatmul.mubr.bf16.gmra.mxu0 %v1194
        %v1897 = vpop.f32.mrf.mxu0
        %v1898 = vadd.f32 %v1737, %v1897
        %v1899 = vpop.f32.mrf.mxu0
        %v1900 = vpop.f32.mrf.mxu0
        %v1901 = vadd.f32 %v1740, %v1900
        %v1902 = vpop.f32.mrf.mxu0
        %1903 = vmatprep.mubr.bf16.mxu0 %v1068
        %1904 = vmatmul.mubr.bf16.gmra.mxu0 %v1195
        %v1905 = vpop.f32.mrf.mxu0
        %v1906 = vadd.f32 %v1745, %v1905
        %v1907 = vpop.f32.mrf.mxu0
        %v1908 = vpop.f32.mrf.mxu0
        %v1909 = vadd.f32 %v1748, %v1908
        %v1910 = vpop.f32.mrf.mxu0
        %1911 = vmatprep.mubr.bf16.mxu0 %v1069
        %1912 = vmatmul.mubr.bf16.gmra.mxu0 %v1196
        %v1913 = vpop.f32.mrf.mxu0
        %v1914 = vadd.f32 %v1753, %v1913
        %v1915 = vpop.f32.mrf.mxu0
        %v1916 = vpop.f32.mrf.mxu0
        %v1917 = vadd.f32 %v1756, %v1916
        %v1918 = vpop.f32.mrf.mxu0
        %1919 = vmatprep.mubr.bf16.mxu0 %v1070
        %1920 = vmatmul.mubr.bf16.gmra.mxu0 %v1197
        %v1921 = vpop.f32.mrf.mxu0
        %v1922 = vadd.f32 %v1761, %v1921
        %v1923 = vpop.f32.mrf.mxu0
        %v1924 = vpop.f32.mrf.mxu0
        %v1925 = vadd.f32 %v1764, %v1924
        %v1926 = vpop.f32.mrf.mxu0
        %1927 = vmatprep.mubr.bf16.mxu0 %v1071
        %1928 = vmatmul.mubr.bf16.gmra.mxu0 %v1198
        %v1929 = vpop.f32.mrf.mxu0
        %v1930 = vadd.f32 %v1769, %v1929
        %v1931 = vpop.f32.mrf.mxu0
        %v1932 = vpop.f32.mrf.mxu0
        %v1933 = vadd.f32 %v1772, %v1932
        %v1934 = vpop.f32.mrf.mxu0
        %1935 = vmatprep.mubr.bf16.mxu0 %v1072
        %1936 = vmatmul.mubr.bf16.gmra.mxu0 %v1199
        %v1937 = vpop.f32.mrf.mxu0
        %v1938 = vadd.f32 %v1777, %v1937
        %v1939 = vpop.f32.mrf.mxu0
        %v1940 = vpop.f32.mrf.mxu0
        %v1941 = vadd.f32 %v1780, %v1940
        %v1942 = vpop.f32.mrf.mxu0
        %1943 = vmatprep.mubr.bf16.mxu0 %v1073
        %1944 = vmatmul.mubr.bf16.gmra.mxu0 %v1200
        %v1945 = vpop.f32.mrf.mxu0
        %v1946 = vadd.f32 %v1785, %v1945
        %v1947 = vpop.f32.mrf.mxu0
        %v1948 = vpop.f32.mrf.mxu0
        %v1949 = vadd.f32 %v1788, %v1948
        %v1950 = vpop.f32.mrf.mxu0
        %1951 = vmatprep.mubr.bf16.mxu0 %v1074
        %1952 = vmatmul.mubr.bf16.gmra.mxu0 %v1201
        %v1953 = vpop.f32.mrf.mxu0
        %v1954 = vadd.f32 %v1793, %v1953
        %v1955 = vpop.f32.mrf.mxu0
        %v1956 = vpop.f32.mrf.mxu0
        %v1957 = vadd.f32 %v1796, %v1956
        %v1958 = vpop.f32.mrf.mxu0
        %1959 = vmatprep.mubr.bf16.mxu0 %v1075
        %1960 = vmatmul.mubr.bf16.gmra.mxu0 %v1202
        %v1961 = vpop.f32.mrf.mxu0
        %v1962 = vadd.f32 %v1801, %v1961
        %v1963 = vpop.f32.mrf.mxu0
        %v1964 = vpop.f32.mrf.mxu0
        %v1965 = vadd.f32 %v1804, %v1964
        %v1966 = vpop.f32.mrf.mxu0
        %1967 = vmatprep.mubr.bf16.mxu0 %v1076
        %1968 = vmatmul.mubr.bf16.gmra.mxu0 %v1203
        %v1969 = vpop.f32.mrf.mxu0
        %v1970 = vadd.f32 %v1809, %v1969
        %v1971 = vpop.f32.mrf.mxu0
        %v1972 = vpop.f32.mrf.mxu0
        %v1973 = vadd.f32 %v1812, %v1972
        %v1974 = vpop.f32.mrf.mxu0
        %1975 = vmatprep.mubr.bf16.mxu0 %v1077
        %1976 = vmatmul.mubr.bf16.gmra.mxu0 %v1204
        %v1977 = vpop.f32.mrf.mxu0
        %v1978 = vadd.f32 %v1817, %v1977
        %v1979 = vpop.f32.mrf.mxu0
        %v1980 = vpop.f32.mrf.mxu0
        %v1981 = vadd.f32 %v1820, %v1980
        %v1982 = vpop.f32.mrf.mxu0
        %1983 = vmatprep.mubr.bf16.mxu0 %v1078
        %1984 = vmatmul.mubr.bf16.gmra.mxu0 %v1205
        %v1985 = vpop.f32.mrf.mxu0
        %v1986 = vadd.f32 %v1825, %v1985
        %v1987 = vpop.f32.mrf.mxu0
        %v1988 = vpop.f32.mrf.mxu0
        %v1989 = vadd.f32 %v1828, %v1988
        %v1990 = vpop.f32.mrf.mxu0
        %1991 = vmatprep.mubr.bf16.mxu0 %v1079
        %1992 = vmatmul.mubr.bf16.gmra.mxu0 %v1206
        %v1993 = vpop.f32.mrf.mxu0
        %v1994 = vadd.f32 %v1833, %v1993
        %v1995 = vpop.f32.mrf.mxu0
        %v1996 = vpop.f32.mrf.mxu0
        %v1997 = vadd.f32 %v1836, %v1996
        %v1998 = vpop.f32.mrf.mxu0
        %1999 = vmatprep.mubr.bf16.mxu0 %v1226
        %2000 = vmatmul.mubr.bf16.gmra.mxu0 %v1207
        %v2001 = vpop.f32.mrf.mxu0
        %v2002 = vadd.f32 %v1841, %v2001
        %v2003 = vpop.f32.mrf.mxu0
        %v2004 = vpop.f32.mrf.mxu0
        %v2005 = vadd.f32 %v1844, %v2004
        %v2006 = vpop.f32.mrf.mxu0
        %2007 = vdwg.mxu0
        %2008 = vmatprep.subr.bf16.mxu0 0
        %2009 = vmatpush1.bf16.msra.mxu0 %v1581
        %2010 = vmatprep.subr.bf16.mxu0 0
        %2011 = vmatpush1.bf16.msra.mxu0 %v1580
        %2012 = vmatprep.subr.bf16.mxu0 0
        %2013 = vmatpush1.bf16.msra.mxu0 %v1579
        %2014 = vmatprep.subr.bf16.mxu0 0
        %2015 = vmatpush1.bf16.msra.mxu0 %v1578
        %2016 = vmatprep.subr.bf16.mxu0 0
        %2017 = vmatpush1.bf16.msra.mxu0 %v1577
        %2018 = vmatprep.subr.bf16.mxu0 0
        %2019 = vmatpush1.bf16.msra.mxu0 %v1576
        %2020 = vmatprep.subr.bf16.mxu0 0
        %2021 = vmatpush1.bf16.msra.mxu0 %v1575
        %2022 = vmatprep.subr.bf16.mxu0 0
        %2023 = vmatpush1.bf16.msra.mxu0 %v1574
        %2024 = vmatprep.subr.bf16.mxu0 0
        %2025 = vmatpush2.bf16.msra.mxu0 %v1589
        %2026 = vmatprep.subr.bf16.mxu0 0
        %2027 = vmatpush2.bf16.msra.mxu0 %v1588
        %2028 = vmatprep.subr.bf16.mxu0 0
        %2029 = vmatpush2.bf16.msra.mxu0 %v1587
        %2030 = vmatprep.subr.bf16.mxu0 0
        %2031 = vmatpush2.bf16.msra.mxu0 %v1586
        %2032 = vmatprep.subr.bf16.mxu0 0
        %2033 = vmatpush2.bf16.msra.mxu0 %v1585
        %2034 = vmatprep.subr.bf16.mxu0 0
        %2035 = vmatpush2.bf16.msra.mxu0 %v1584
        %2036 = vmatprep.subr.bf16.mxu0 0
        %2037 = vmatpush2.bf16.msra.mxu0 %v1583
        %2038 = vmatprep.subr.bf16.mxu0 0
        %2039 = vmatpush2.bf16.msra.mxu0 %v1582
        %2040 = vmatprep.mubr.bf16.mxu0 %v1193
        %2041 = vmatmul.mubr.bf16.gmra.mxu0 %v1129
        %v2042 = vpop.f32.mrf.mxu0
        %v2043 = vadd.f32 %v1882, %v2042
        %v2044 = vpop.f32.mrf.mxu0
        %v2045 = vpop.f32.mrf.mxu0
        %v2046 = vadd.f32 %v1885, %v2045
        %v2047 = vpop.f32.mrf.mxu0
        %2048 = vmatprep.mubr.bf16.mxu0 %v1194
        %2049 = vmatmul.mubr.bf16.gmra.mxu0 %v1130
        %v2050 = vpop.f32.mrf.mxu0
        %v2051 = vadd.f32 %v1890, %v2050
        %v2052 = vpop.f32.mrf.mxu0
        %v2053 = vpop.f32.mrf.mxu0
        %v2054 = vadd.f32 %v1893, %v2053
        %v2055 = vpop.f32.mrf.mxu0
        %2056 = vmatprep.mubr.bf16.mxu0 %v1195
        %2057 = vmatmul.mubr.bf16.gmra.mxu0 %v1131
        %v2058 = vpop.f32.mrf.mxu0
        %v2059 = vadd.f32 %v1898, %v2058
        %v2060 = vpop.f32.mrf.mxu0
        %v2061 = vpop.f32.mrf.mxu0
        %v2062 = vadd.f32 %v1901, %v2061
        %v2063 = vpop.f32.mrf.mxu0
        %2064 = vmatprep.mubr.bf16.mxu0 %v1196
        %2065 = vmatmul.mubr.bf16.gmra.mxu0 %v1132
        %v2066 = vpop.f32.mrf.mxu0
        %v2067 = vadd.f32 %v1906, %v2066
        %v2068 = vpop.f32.mrf.mxu0
        %v2069 = vpop.f32.mrf.mxu0
        %v2070 = vadd.f32 %v1909, %v2069
        %v2071 = vpop.f32.mrf.mxu0
        %2072 = vmatprep.mubr.bf16.mxu0 %v1197
        %2073 = vmatmul.mubr.bf16.gmra.mxu0 %v1133
        %v2074 = vpop.f32.mrf.mxu0
        %v2075 = vadd.f32 %v1914, %v2074
        %v2076 = vpop.f32.mrf.mxu0
        %v2077 = vpop.f32.mrf.mxu0
        %v2078 = vadd.f32 %v1917, %v2077
        %v2079 = vpop.f32.mrf.mxu0
        %2080 = vmatprep.mubr.bf16.mxu0 %v1198
        %2081 = vmatmul.mubr.bf16.gmra.mxu0 %v1134
        %v2082 = vpop.f32.mrf.mxu0
        %v2083 = vadd.f32 %v1922, %v2082
        %v2084 = vpop.f32.mrf.mxu0
        %v2085 = vpop.f32.mrf.mxu0
        %v2086 = vadd.f32 %v1925, %v2085
        %v2087 = vpop.f32.mrf.mxu0
        %2088 = vmatprep.mubr.bf16.mxu0 %v1199
        %2089 = vmatmul.mubr.bf16.gmra.mxu0 %v1135
        %v2090 = vpop.f32.mrf.mxu0
        %v2091 = vadd.f32 %v1930, %v2090
        %v2092 = vpop.f32.mrf.mxu0
        %v2093 = vpop.f32.mrf.mxu0
        %v2094 = vadd.f32 %v1933, %v2093
        %v2095 = vpop.f32.mrf.mxu0
        %2096 = vmatprep.mubr.bf16.mxu0 %v1200
        %2097 = vmatmul.mubr.bf16.gmra.mxu0 %v1136
        %v2098 = vpop.f32.mrf.mxu0
        %v2099 = vadd.f32 %v1938, %v2098
        %v2100 = vpop.f32.mrf.mxu0
        %v2101 = vpop.f32.mrf.mxu0
        %v2102 = vadd.f32 %v1941, %v2101
        %v2103 = vpop.f32.mrf.mxu0
        %2104 = vmatprep.mubr.bf16.mxu0 %v1201
        %2105 = vmatmul.mubr.bf16.gmra.mxu0 %v1137
        %v2106 = vpop.f32.mrf.mxu0
        %v2107 = vadd.f32 %v1946, %v2106
        %v2108 = vpop.f32.mrf.mxu0
        %v2109 = vpop.f32.mrf.mxu0
        %v2110 = vadd.f32 %v1949, %v2109
        %v2111 = vpop.f32.mrf.mxu0
        %2112 = vmatprep.mubr.bf16.mxu0 %v1202
        %2113 = vmatmul.mubr.bf16.gmra.mxu0 %v1138
        %v2114 = vpop.f32.mrf.mxu0
        %v2115 = vadd.f32 %v1954, %v2114
        %v2116 = vpop.f32.mrf.mxu0
        %v2117 = vpop.f32.mrf.mxu0
        %v2118 = vadd.f32 %v1957, %v2117
        %v2119 = vpop.f32.mrf.mxu0
        %2120 = vmatprep.mubr.bf16.mxu0 %v1203
        %2121 = vmatmul.mubr.bf16.gmra.mxu0 %v1139
        %v2122 = vpop.f32.mrf.mxu0
        %v2123 = vadd.f32 %v1962, %v2122
        %v2124 = vpop.f32.mrf.mxu0
        %v2125 = vpop.f32.mrf.mxu0
        %v2126 = vadd.f32 %v1965, %v2125
        %v2127 = vpop.f32.mrf.mxu0
        %2128 = vmatprep.mubr.bf16.mxu0 %v1204
        %2129 = vmatmul.mubr.bf16.gmra.mxu0 %v1140
        %v2130 = vpop.f32.mrf.mxu0
        %v2131 = vadd.f32 %v1970, %v2130
        %v2132 = vpop.f32.mrf.mxu0
        %v2133 = vpop.f32.mrf.mxu0
        %v2134 = vadd.f32 %v1973, %v2133
        %v2135 = vpop.f32.mrf.mxu0
        %2136 = vmatprep.mubr.bf16.mxu0 %v1205
        %2137 = vmatmul.mubr.bf16.gmra.mxu0 %v1141
        %v2138 = vpop.f32.mrf.mxu0
        %v2139 = vadd.f32 %v1978, %v2138
        %v2140 = vpop.f32.mrf.mxu0
        %v2141 = vpop.f32.mrf.mxu0
        %v2142 = vadd.f32 %v1981, %v2141
        %v2143 = vpop.f32.mrf.mxu0
        %2144 = vmatprep.mubr.bf16.mxu0 %v1206
        %2145 = vmatmul.mubr.bf16.gmra.mxu0 %v1142
        %v2146 = vpop.f32.mrf.mxu0
        %v2147 = vadd.f32 %v1986, %v2146
        %v2148 = vpop.f32.mrf.mxu0
        %v2149 = vpop.f32.mrf.mxu0
        %v2150 = vadd.f32 %v1989, %v2149
        %v2151 = vpop.f32.mrf.mxu0
        %2152 = vmatprep.mubr.bf16.mxu0 %v1207
        %2153 = vmatmul.mubr.bf16.gmra.mxu0 %v1143
        %v2154 = vpop.f32.mrf.mxu0
        %v2155 = vadd.f32 %v1994, %v2154
        %v2156 = vpop.f32.mrf.mxu0
        %v2157 = vpop.f32.mrf.mxu0
        %v2158 = vadd.f32 %v1997, %v2157
        %v2159 = vpop.f32.mrf.mxu0
        %2160 = vmatprep.mubr.bf16.mxu0 %v1234
        %2161 = vmatmul.mubr.bf16.gmra.mxu0 %v1230
        %v2162 = vpop.f32.mrf.mxu0
        %v2163 = vadd.f32 %v2002, %v2162
        %v2164 = vpop.f32.mrf.mxu0
        %v2165 = vpop.f32.mrf.mxu0
        %v2166 = vadd.f32 %v2005, %v2165
        %v2167 = vpop.f32.mrf.mxu0
        %2168 = vdwg.mxu0
        %2169 = vmatprep.subr.bf16.mxu0 0
        %2170 = vmatpush1.bf16.msra.mxu0 %v1597
        %2171 = vmatprep.subr.bf16.mxu0 0
        %2172 = vmatpush1.bf16.msra.mxu0 %v1596
        %2173 = vmatprep.subr.bf16.mxu0 0
        %2174 = vmatpush1.bf16.msra.mxu0 %v1595
        %2175 = vmatprep.subr.bf16.mxu0 0
        %2176 = vmatpush1.bf16.msra.mxu0 %v1594
        %2177 = vmatprep.subr.bf16.mxu0 0
        %2178 = vmatpush1.bf16.msra.mxu0 %v1593
        %2179 = vmatprep.subr.bf16.mxu0 0
        %2180 = vmatpush1.bf16.msra.mxu0 %v1592
        %2181 = vmatprep.subr.bf16.mxu0 0
        %2182 = vmatpush1.bf16.msra.mxu0 %v1591
        %2183 = vmatprep.subr.bf16.mxu0 0
        %2184 = vmatpush1.bf16.msra.mxu0 %v1590
        %2185 = vmatprep.subr.bf16.mxu0 0
        %2186 = vmatpush2.bf16.msra.mxu0 %v1605
        %2187 = vmatprep.subr.bf16.mxu0 0
        %2188 = vmatpush2.bf16.msra.mxu0 %v1604
        %2189 = vmatprep.subr.bf16.mxu0 0
        %2190 = vmatpush2.bf16.msra.mxu0 %v1603
        %2191 = vmatprep.subr.bf16.mxu0 0
        %2192 = vmatpush2.bf16.msra.mxu0 %v1602
        %2193 = vmatprep.subr.bf16.mxu0 0
        %2194 = vmatpush2.bf16.msra.mxu0 %v1601
        %2195 = vmatprep.subr.bf16.mxu0 0
        %2196 = vmatpush2.bf16.msra.mxu0 %v1600
        %2197 = vmatprep.subr.bf16.mxu0 0
        %2198 = vmatpush2.bf16.msra.mxu0 %v1599
        %2199 = vmatprep.subr.bf16.mxu0 0
        %2200 = vmatpush2.bf16.msra.mxu0 %v1598
        %2201 = vmatprep.mubr.bf16.mxu0 %v1130
        %2202 = vmatmul.mubr.bf16.gmra.mxu0 %v1066
        %v2203 = vpop.f32.mrf.mxu0
        %v2204 = vadd.f32 %v2043, %v2203
        %v2205 = vpop.f32.mrf.mxu0
        %v2206 = vpop.f32.mrf.mxu0
        %v2207 = vadd.f32 %v2046, %v2206
        %v2208 = vpop.f32.mrf.mxu0
        %2209 = vmatprep.mubr.bf16.mxu0 %v1131
        %2210 = vmatmul.mubr.bf16.gmra.mxu0 %v1067
        %v2211 = vpop.f32.mrf.mxu0
        %v2212 = vadd.f32 %v2051, %v2211
        %v2213 = vpop.f32.mrf.mxu0
        %v2214 = vpop.f32.mrf.mxu0
        %v2215 = vadd.f32 %v2054, %v2214
        %v2216 = vpop.f32.mrf.mxu0
        %2217 = vmatprep.mubr.bf16.mxu0 %v1132
        %2218 = vmatmul.mubr.bf16.gmra.mxu0 %v1068
        %v2219 = vpop.f32.mrf.mxu0
        %v2220 = vadd.f32 %v2059, %v2219
        %v2221 = vpop.f32.mrf.mxu0
        %v2222 = vpop.f32.mrf.mxu0
        %v2223 = vadd.f32 %v2062, %v2222
        %v2224 = vpop.f32.mrf.mxu0
        %2225 = vmatprep.mubr.bf16.mxu0 %v1133
        %2226 = vmatmul.mubr.bf16.gmra.mxu0 %v1069
        %v2227 = vpop.f32.mrf.mxu0
        %v2228 = vadd.f32 %v2067, %v2227
        %v2229 = vpop.f32.mrf.mxu0
        %v2230 = vpop.f32.mrf.mxu0
        %v2231 = vadd.f32 %v2070, %v2230
        %v2232 = vpop.f32.mrf.mxu0
        %2233 = vmatprep.mubr.bf16.mxu0 %v1134
        %2234 = vmatmul.mubr.bf16.gmra.mxu0 %v1070
        %v2235 = vpop.f32.mrf.mxu0
        %v2236 = vadd.f32 %v2075, %v2235
        %v2237 = vpop.f32.mrf.mxu0
        %v2238 = vpop.f32.mrf.mxu0
        %v2239 = vadd.f32 %v2078, %v2238
        %v2240 = vpop.f32.mrf.mxu0
        %2241 = vmatprep.mubr.bf16.mxu0 %v1135
        %2242 = vmatmul.mubr.bf16.gmra.mxu0 %v1071
        %v2243 = vpop.f32.mrf.mxu0
        %v2244 = vadd.f32 %v2083, %v2243
        %v2245 = vpop.f32.mrf.mxu0
        %v2246 = vpop.f32.mrf.mxu0
        %v2247 = vadd.f32 %v2086, %v2246
        %v2248 = vpop.f32.mrf.mxu0
        %2249 = vmatprep.mubr.bf16.mxu0 %v1136
        %2250 = vmatmul.mubr.bf16.gmra.mxu0 %v1072
        %v2251 = vpop.f32.mrf.mxu0
        %v2252 = vadd.f32 %v2091, %v2251
        %v2253 = vpop.f32.mrf.mxu0
        %v2254 = vpop.f32.mrf.mxu0
        %v2255 = vadd.f32 %v2094, %v2254
        %v2256 = vpop.f32.mrf.mxu0
        %2257 = vmatprep.mubr.bf16.mxu0 %v1137
        %2258 = vmatmul.mubr.bf16.gmra.mxu0 %v1073
        %v2259 = vpop.f32.mrf.mxu0
        %v2260 = vadd.f32 %v2099, %v2259
        %v2261 = vpop.f32.mrf.mxu0
        %v2262 = vpop.f32.mrf.mxu0
        %v2263 = vadd.f32 %v2102, %v2262
        %v2264 = vpop.f32.mrf.mxu0
        %2265 = vmatprep.mubr.bf16.mxu0 %v1138
        %2266 = vmatmul.mubr.bf16.gmra.mxu0 %v1074
        %v2267 = vpop.f32.mrf.mxu0
        %v2268 = vadd.f32 %v2107, %v2267
        %v2269 = vpop.f32.mrf.mxu0
        %v2270 = vpop.f32.mrf.mxu0
        %v2271 = vadd.f32 %v2110, %v2270
        %v2272 = vpop.f32.mrf.mxu0
        %2273 = vmatprep.mubr.bf16.mxu0 %v1139
        %2274 = vmatmul.mubr.bf16.gmra.mxu0 %v1075
        %v2275 = vpop.f32.mrf.mxu0
        %v2276 = vadd.f32 %v2115, %v2275
        %v2277 = vpop.f32.mrf.mxu0
        %v2278 = vpop.f32.mrf.mxu0
        %v2279 = vadd.f32 %v2118, %v2278
        %v2280 = vpop.f32.mrf.mxu0
        %2281 = vmatprep.mubr.bf16.mxu0 %v1140
        %2282 = vmatmul.mubr.bf16.gmra.mxu0 %v1076
        %v2283 = vpop.f32.mrf.mxu0
        %v2284 = vadd.f32 %v2123, %v2283
        %v2285 = vpop.f32.mrf.mxu0
        %v2286 = vpop.f32.mrf.mxu0
        %v2287 = vadd.f32 %v2126, %v2286
        %v2288 = vpop.f32.mrf.mxu0
        %2289 = vmatprep.mubr.bf16.mxu0 %v1141
        %2290 = vmatmul.mubr.bf16.gmra.mxu0 %v1077
        %v2291 = vpop.f32.mrf.mxu0
        %v2292 = vadd.f32 %v2131, %v2291
        %v2293 = vpop.f32.mrf.mxu0
        %v2294 = vpop.f32.mrf.mxu0
        %v2295 = vadd.f32 %v2134, %v2294
        %v2296 = vpop.f32.mrf.mxu0
        %2297 = vmatprep.mubr.bf16.mxu0 %v1142
        %2298 = vmatmul.mubr.bf16.gmra.mxu0 %v1078
        %v2299 = vpop.f32.mrf.mxu0
        %v2300 = vadd.f32 %v2139, %v2299
        %v2301 = vpop.f32.mrf.mxu0
        %v2302 = vpop.f32.mrf.mxu0
        %v2303 = vadd.f32 %v2142, %v2302
        %v2304 = vpop.f32.mrf.mxu0
        %2305 = vmatprep.mubr.bf16.mxu0 %v1143
        %2306 = vmatmul.mubr.bf16.gmra.mxu0 %v1079
        %v2307 = vpop.f32.mrf.mxu0
        %v2308 = vadd.f32 %v2147, %v2307
        %v2309 = vpop.f32.mrf.mxu0
        %v2310 = vpop.f32.mrf.mxu0
        %v2311 = vadd.f32 %v2150, %v2310
        %v2312 = vpop.f32.mrf.mxu0
        %2313 = vmatprep.mubr.bf16.mxu0 %v1230
        %2314 = vmatmul.mubr.bf16.gmra.mxu0 %v1226
        %v2315 = vpop.f32.mrf.mxu0
        %v2316 = vadd.f32 %v2155, %v2315
        %v2317 = vpop.f32.mrf.mxu0
        %v2318 = vpop.f32.mrf.mxu0
        %v2319 = vadd.f32 %v2158, %v2318
        %v2320 = vpop.f32.mrf.mxu0
        %2321 = vmatprep.mubr.bf16.mxu0 %v1242
        %2322 = vmatmul.mubr.bf16.gmra.mxu0 %v1238
        %v2323 = vpop.f32.mrf.mxu0
        %v2324 = vadd.f32 %v2163, %v2323
        %v2325 = vpop.f32.mrf.mxu0
        %v2326 = vpop.f32.mrf.mxu0
        %v2327 = vadd.f32 %v2166, %v2326
        %v2328 = vpop.f32.mrf.mxu0
        %2329 = vdwg.mxu0
        %2330 = vmatprep.subr.bf16.mxu0 0
        %2331 = vmatpush1.bf16.msra.mxu0 %v1613
        %2332 = vmatprep.subr.bf16.mxu0 0
        %2333 = vmatpush1.bf16.msra.mxu0 %v1612
        %2334 = vmatprep.subr.bf16.mxu0 0
        %2335 = vmatpush1.bf16.msra.mxu0 %v1611
        %2336 = vmatprep.subr.bf16.mxu0 0
        %2337 = vmatpush1.bf16.msra.mxu0 %v1610
        %2338 = vmatprep.subr.bf16.mxu0 0
        %2339 = vmatpush1.bf16.msra.mxu0 %v1609
        %2340 = vmatprep.subr.bf16.mxu0 0
        %2341 = vmatpush1.bf16.msra.mxu0 %v1608
        %2342 = vmatprep.subr.bf16.mxu0 0
        %2343 = vmatpush1.bf16.msra.mxu0 %v1607
        %2344 = vmatprep.subr.bf16.mxu0 0
        %2345 = vmatpush1.bf16.msra.mxu0 %v1606
        %2346 = vmatprep.subr.bf16.mxu0 0
        %2347 = vmatpush2.bf16.msra.mxu0 0
        %2348 = vmatprep.subr.bf16.mxu0 0
        %2349 = vmatpush2.bf16.msra.mxu0 0
        %2350 = vmatprep.subr.bf16.mxu0 0
        %2351 = vmatpush2.bf16.msra.mxu0 0
        %2352 = vmatprep.subr.bf16.mxu0 0
        %2353 = vmatpush2.bf16.msra.mxu0 0
        %2354 = vmatprep.subr.bf16.mxu0 0
        %2355 = vmatpush2.bf16.msra.mxu0 0
        %2356 = vmatprep.subr.bf16.mxu0 0
        %2357 = vmatpush2.bf16.msra.mxu0 0
        %2358 = vmatprep.subr.bf16.mxu0 0
        %2359 = vmatpush2.bf16.msra.mxu0 0
        %2360 = vmatprep.subr.bf16.mxu0 0
        %2361 = vmatpush2.bf16.msra.mxu0 0
        %2362 = vmatprep.mubr.bf16.mxu0 0
        %2363 = vmatmul.mubr.bf16.gmra.mxu0 %v1194
        %v2364 = vpop.f32.mrf.mxu0
        %v2365 = vadd.f32 %v2204, %v2364
        %v2366 = vpop.f32.mrf.mxu0
        %v2367 = vpop.f32.mrf.mxu0
        %v2368 = vadd.f32 %v2207, %v2367
        %v2369 = vpop.f32.mrf.mxu0
        %2370 = vmatprep.mubr.bf16.mxu0 0
        %2371 = vmatmul.mubr.bf16.gmra.mxu0 %v1195
        %v2372 = vpop.f32.mrf.mxu0
        %v2373 = vadd.f32 %v2212, %v2372
        %v2374 = vpop.f32.mrf.mxu0
        %v2375 = vpop.f32.mrf.mxu0
        %v2376 = vadd.f32 %v2215, %v2375
        %v2377 = vpop.f32.mrf.mxu0
        %2378 = vmatprep.mubr.bf16.mxu0 0
        %2379 = vmatmul.mubr.bf16.gmra.mxu0 %v1196
        %v2380 = vpop.f32.mrf.mxu0
        %v2381 = vadd.f32 %v2220, %v2380
        %v2382 = vpop.f32.mrf.mxu0
        %v2383 = vpop.f32.mrf.mxu0
        %v2384 = vadd.f32 %v2223, %v2383
        %v2385 = vpop.f32.mrf.mxu0
        %2386 = vmatprep.mubr.bf16.mxu0 0
        %2387 = vmatmul.mubr.bf16.gmra.mxu0 %v1197
        %v2388 = vpop.f32.mrf.mxu0
        %v2389 = vadd.f32 %v2228, %v2388
        %v2390 = vpop.f32.mrf.mxu0
        %v2391 = vpop.f32.mrf.mxu0
        %v2392 = vadd.f32 %v2231, %v2391
        %v2393 = vpop.f32.mrf.mxu0
        %2394 = vmatprep.mubr.bf16.mxu0 0
        %2395 = vmatmul.mubr.bf16.gmra.mxu0 %v1198
        %v2396 = vpop.f32.mrf.mxu0
        %v2397 = vadd.f32 %v2236, %v2396
        %v2398 = vpop.f32.mrf.mxu0
        %v2399 = vpop.f32.mrf.mxu0
        %v2400 = vadd.f32 %v2239, %v2399
        %v2401 = vpop.f32.mrf.mxu0
        %2402 = vmatprep.mubr.bf16.mxu0 0
        %2403 = vmatmul.mubr.bf16.gmra.mxu0 %v1199
        %v2404 = vpop.f32.mrf.mxu0
        %v2405 = vadd.f32 %v2244, %v2404
        %v2406 = vpop.f32.mrf.mxu0
        %v2407 = vpop.f32.mrf.mxu0
        %v2408 = vadd.f32 %v2247, %v2407
        %v2409 = vpop.f32.mrf.mxu0
        %2410 = vmatprep.mubr.bf16.mxu0 0
        %2411 = vmatmul.mubr.bf16.gmra.mxu0 %v1200
        %v2412 = vpop.f32.mrf.mxu0
        %v2413 = vadd.f32 %v2252, %v2412
        %v2414 = vpop.f32.mrf.mxu0
        %v2415 = vpop.f32.mrf.mxu0
        %v2416 = vadd.f32 %v2255, %v2415
        %v2417 = vpop.f32.mrf.mxu0
        %2418 = vmatprep.mubr.bf16.mxu0 0
        %2419 = vmatmul.mubr.bf16.gmra.mxu0 %v1201
        %v2420 = vpop.f32.mrf.mxu0
        %v2421 = vadd.f32 %v2260, %v2420
        %v2422 = vpop.f32.mrf.mxu0
        %v2423 = vpop.f32.mrf.mxu0
        %v2424 = vadd.f32 %v2263, %v2423
        %v2425 = vpop.f32.mrf.mxu0
        %2426 = vmatprep.mubr.bf16.mxu0 0
        %2427 = vmatmul.mubr.bf16.gmra.mxu0 %v1202
        %v2428 = vpop.f32.mrf.mxu0
        %v2429 = vadd.f32 %v2268, %v2428
        %v2430 = vpop.f32.mrf.mxu0
        %v2431 = vpop.f32.mrf.mxu0
        %v2432 = vadd.f32 %v2271, %v2431
        %v2433 = vpop.f32.mrf.mxu0
        %2434 = vmatprep.mubr.bf16.mxu0 0
        %2435 = vmatmul.mubr.bf16.gmra.mxu0 %v1203
        %v2436 = vpop.f32.mrf.mxu0
        %v2437 = vadd.f32 %v2276, %v2436
        %v2438 = vpop.f32.mrf.mxu0
        %v2439 = vpop.f32.mrf.mxu0
        %v2440 = vadd.f32 %v2279, %v2439
        %v2441 = vpop.f32.mrf.mxu0
        %2442 = vmatprep.mubr.bf16.mxu0 0
        %2443 = vmatmul.mubr.bf16.gmra.mxu0 %v1204
        %v2444 = vpop.f32.mrf.mxu0
        %v2445 = vadd.f32 %v2284, %v2444
        %v2446 = vpop.f32.mrf.mxu0
        %v2447 = vpop.f32.mrf.mxu0
        %v2448 = vadd.f32 %v2287, %v2447
        %v2449 = vpop.f32.mrf.mxu0
        %2450 = vmatprep.mubr.bf16.mxu0 0
        %2451 = vmatmul.mubr.bf16.gmra.mxu0 %v1205
        %v2452 = vpop.f32.mrf.mxu0
        %v2453 = vadd.f32 %v2292, %v2452
        %v2454 = vpop.f32.mrf.mxu0
        %v2455 = vpop.f32.mrf.mxu0
        %v2456 = vadd.f32 %v2295, %v2455
        %v2457 = vpop.f32.mrf.mxu0
        %2458 = vmatprep.mubr.bf16.mxu0 0
        %2459 = vmatmul.mubr.bf16.gmra.mxu0 %v1206
        %v2460 = vpop.f32.mrf.mxu0
        %v2461 = vadd.f32 %v2300, %v2460
        %v2462 = vpop.f32.mrf.mxu0
        %v2463 = vpop.f32.mrf.mxu0
        %v2464 = vadd.f32 %v2303, %v2463
        %v2465 = vpop.f32.mrf.mxu0
        %2466 = vmatprep.mubr.bf16.mxu0 0
        %2467 = vmatmul.mubr.bf16.gmra.mxu0 %v1207
        %v2468 = vpop.f32.mrf.mxu0
        %v2469 = vadd.f32 %v2308, %v2468
        %v2470 = vpop.f32.mrf.mxu0
        %v2471 = vpop.f32.mrf.mxu0
        %v2472 = vadd.f32 %v2311, %v2471
        %v2473 = vpop.f32.mrf.mxu0
        %2474 = vmatprep.mubr.bf16.mxu0 0
        %2475 = vmatmul.mubr.bf16.gmra.mxu0 %v1234
        %v2476 = vpop.f32.mrf.mxu0
        %v2477 = vadd.f32 %v2316, %v2476
        %v2478 = vpop.f32.mrf.mxu0
        %v2479 = vpop.f32.mrf.mxu0
        %v2480 = vadd.f32 %v2319, %v2479
        %v2481 = vpop.f32.mrf.mxu0
        %2482 = vmatprep.mubr.bf16.mxu0 0
        %2483 = vmatmul.mubr.bf16.gmra.mxu0 %v1246
        %v2484 = vpop.f32.mrf.mxu0
        %v2485 = vadd.f32 %v2324, %v2484
        %v2486 = vpop.f32.mrf.mxu0
        %v2487 = vpop.f32.mrf.mxu0
        %v2488 = vadd.f32 %v2327, %v2487
        %v2489 = vpop.f32.mrf.mxu0
        %2490 = vdwg.mxu0
        %v2491 = vmax.f32 %v2365, 0.0
        %v2492 = vmax.f32 %v2368, 0.0
        %v2493 = vmax.f32 %v2373, 0.0
        %v2494 = vmax.f32 %v2376, 0.0
        %v2495 = vmax.f32 %v2381, 0.0
        %v2496 = vmax.f32 %v2384, 0.0
        %v2497 = vmax.f32 %v2389, 0.0
        %v2498 = vmax.f32 %v2392, 0.0
        %v2499 = vmax.f32 %v2397, 0.0
        %v2500 = vmax.f32 %v2400, 0.0
        %v2501 = vmax.f32 %v2405, 0.0
        %v2502 = vmax.f32 %v2408, 0.0
        %v2503 = vmax.f32 %v2413, 0.0
        %v2504 = vmax.f32 %v2416, 0.0
        %v2505 = vmax.f32 %v2421, 0.0
        %v2506 = vmax.f32 %v2424, 0.0
        %v2507 = vmax.f32 %v2429, 0.0
        %v2508 = vmax.f32 %v2432, 0.0
        %v2509 = vmax.f32 %v2437, 0.0
        %v2510 = vmax.f32 %v2440, 0.0
        %v2511 = vmax.f32 %v2445, 0.0
        %v2512 = vmax.f32 %v2448, 0.0
        %v2513 = vmax.f32 %v2453, 0.0
        %v2514 = vmax.f32 %v2456, 0.0
        %v2515 = vmax.f32 %v2461, 0.0
        %v2516 = vmax.f32 %v2464, 0.0
        %v2517 = vmax.f32 %v2469, 0.0
        %v2518 = vmax.f32 %v2472, 0.0
        %v2519 = vmax.f32 %v2477, 0.0
        %v2520 = vmax.f32 %v2480, 0.0
        %v2521 = vmax.f32 %v2485, 0.0
        %v2522 = vmax.f32 %v2488, 0.0
        %v2523 = vpack.c.bf16 %v2492, %v2491
        %v2524 = vpack.c.bf16 %v2494, %v2493
        %v2525 = vpack.c.bf16 %v2496, %v2495
        %v2526 = vpack.c.bf16 %v2498, %v2497
        %v2527 = vpack.c.bf16 %v2500, %v2499
        %v2528 = vpack.c.bf16 %v2502, %v2501
        %v2529 = vpack.c.bf16 %v2504, %v2503
        %v2530 = vpack.c.bf16 %v2506, %v2505
        %v2531 = vpack.c.bf16 %v2508, %v2507
        %v2532 = vpack.c.bf16 %v2510, %v2509
        %v2533 = vpack.c.bf16 %v2512, %v2511
        %v2534 = vpack.c.bf16 %v2514, %v2513
        %v2535 = vpack.c.bf16 %v2516, %v2515
        %v2536 = vpack.c.bf16 %v2518, %v2517
        %v2537 = vpack.c.bf16 %v2520, %v2519
        %v2538 = vpack.c.bf16 %v2522, %v2521
        %v2555 = vunpack.c.l.b16 %v2523
        %v2556 = vunpack.c.h.b16 %v2523
        %v2557 = vunpack.c.l.b16 %v2524
        %v2558 = vunpack.c.h.b16 %v2524
        %v2559 = vunpack.c.l.b16 %v2525
        %v2560 = vunpack.c.h.b16 %v2525
        %v2561 = vunpack.c.l.b16 %v2526
        %v2562 = vunpack.c.h.b16 %v2526
        %v2563 = vunpack.c.l.b16 %v2527
        %v2564 = vunpack.c.h.b16 %v2527
        %v2565 = vunpack.c.l.b16 %v2528
        %v2566 = vunpack.c.h.b16 %v2528
        %v2567 = vunpack.c.l.b16 %v2529
        %v2568 = vunpack.c.h.b16 %v2529
        %v2569 = vunpack.c.l.b16 %v2530
        %v2570 = vunpack.c.h.b16 %v2530
        %v2571 = vunpack.c.l.b16 %v2531
        %v2572 = vunpack.c.h.b16 %v2531
        %v2573 = vunpack.c.l.b16 %v2532
        %v2574 = vunpack.c.h.b16 %v2532
        %v2575 = vunpack.c.l.b16 %v2533
        %v2576 = vunpack.c.h.b16 %v2533
        %v2577 = vunpack.c.l.b16 %v2534
        %v2578 = vunpack.c.h.b16 %v2534
        %v2579 = vunpack.c.l.b16 %v2535
        %v2580 = vunpack.c.h.b16 %v2535
        %v2581 = vunpack.c.l.b16 %v2536
        %v2582 = vunpack.c.h.b16 %v2536
        %v2583 = vunpack.c.l.b16 %v2537
        %v2584 = vunpack.c.h.b16 %v2537
        %v2585 = vunpack.c.l.b16 %v2538
        %v2586 = vunpack.c.h.b16 %v2538
        %v2587 = vpack.c.b16 %v2555, %v2555
        %v2588 = vpack.c.b16 %v2556, %v2556
        %v2589 = vpack.c.b16 %v2557, %v2557
        %v2590 = vpack.c.b16 %v2558, %v2558
        %v2591 = vpack.c.b16 %v2559, %v2559
        %v2592 = vpack.c.b16 %v2560, %v2560
        %v2593 = vpack.c.b16 %v2561, %v2561
        %v2594 = vpack.c.b16 %v2562, %v2562
        %v2595 = vpack.c.b16 %v2563, %v2563
        %v2596 = vpack.c.b16 %v2564, %v2564
        %v2597 = vpack.c.b16 %v2565, %v2565
        %v2598 = vpack.c.b16 %v2566, %v2566
        %v2599 = vpack.c.b16 %v2567, %v2567
        %v2600 = vpack.c.b16 %v2568, %v2568
        %v2601 = vpack.c.b16 %v2569, %v2569
        %v2602 = vpack.c.b16 %v2570, %v2570
        %v2603 = vpack.c.b16 %v2571, %v2571
        %v2604 = vpack.c.b16 %v2572, %v2572
        %v2605 = vpack.c.b16 %v2573, %v2573
        %v2606 = vpack.c.b16 %v2574, %v2574
        %v2607 = vpack.c.b16 %v2575, %v2575
        %v2608 = vpack.c.b16 %v2576, %v2576
        %v2609 = vpack.c.b16 %v2577, %v2577
        %v2610 = vpack.c.b16 %v2578, %v2578
        %v2611 = vpack.c.b16 %v2579, %v2579
        %v2612 = vpack.c.b16 %v2580, %v2580
        %v2613 = vpack.c.b16 %v2581, %v2581
        %v2614 = vpack.c.b16 %v2582, %v2582
        %v2615 = vpack.c.b16 %v2583, %v2583
        %v2616 = vpack.c.b16 %v2584, %v2584
        %v2617 = vpack.c.b16 %v2585, %v2585
        %v2618 = vpack.c.b16 %v2586, %v2586
        %2651 = vst [vmem:[%s201] sm:$0xf] %v2587
        %2652 = vst [vmem:[%s201 + $0x4] sm:$0xf] %v2588
        %2653 = vst [vmem:[%s201 + $0x8] sm:$0xf] %v2589
        %2654 = vst [vmem:[%s201 + $0xc] sm:$0xf] %v2590
        %2655 = vst [vmem:[%s201 + $0x10] sm:$0xf] %v2591
        %2656 = vst [vmem:[%s201 + $0x14] sm:$0xf] %v2592
        %2657 = vst [vmem:[%s201 + $0x18] sm:$0xf] %v2593
        %2658 = vst [vmem:[%s201 + $0x1c] sm:$0xf] %v2594
        %2659 = vst [vmem:[%s201 + $0x20] sm:$0xf] %v2595
        %2660 = vst [vmem:[%s201 + $0x24] sm:$0xf] %v2596
        %2661 = vst [vmem:[%s201 + $0x28] sm:$0xf] %v2597
        %2662 = vst [vmem:[%s201 + $0x2c] sm:$0xf] %v2598
        %2663 = vst [vmem:[%s201 + $0x30] sm:$0xf] %v2599
        %2664 = vst [vmem:[%s201 + $0x34] sm:$0xf] %v2600
        %2665 = vst [vmem:[%s201 + $0x38] sm:$0xf] %v2601
        %2666 = vst [vmem:[%s201 + $0x3c] sm:$0xf] %v2602
        %2667 = vst [vmem:[%s201 + $0x40] sm:$0xf] %v2603
        %2668 = vst [vmem:[%s201 + $0x44] sm:$0xf] %v2604
        %2669 = vst [vmem:[%s201 + $0x48] sm:$0xf] %v2605
        %2670 = vst [vmem:[%s201 + $0x4c] sm:$0xf] %v2606
        %2671 = vst [vmem:[%s201 + $0x50] sm:$0xf] %v2607
        %2672 = vst [vmem:[%s201 + $0x54] sm:$0xf] %v2608
        %2673 = vst [vmem:[%s201 + $0x58] sm:$0xf] %v2609
        %2674 = vst [vmem:[%s201 + $0x5c] sm:$0xf] %v2610
        %2675 = vst [vmem:[%s201 + $0x60] sm:$0xf] %v2611
        %2676 = vst [vmem:[%s201 + $0x64] sm:$0xf] %v2612
        %2677 = vst [vmem:[%s201 + $0x68] sm:$0xf] %v2613
        %2678 = vst [vmem:[%s201 + $0x6c] sm:$0xf] %v2614
        %2679 = vst [vmem:[%s201 + $0x70] sm:$0xf] %v2615
        %2680 = vst [vmem:[%s201 + $0x74] sm:$0xf] %v2616
        %2681 = vst [vmem:[%s201 + $0x78] sm:$0xf] %v2617
        %2682 = vst [vmem:[%s201 + $0x7c] sm:$0xf] %v2618
        %s2683 = sand.u32 %s117, 1
        %s2684 = scalar_lea.sflag [#allocation3], %s2683
        %s2685 = sand.u32 %s117, 1
        %s2686 = smul.addr %s2685, 128
        %s2687 = scalar_lea.vmem [#allocation2], %s2686
        // Predicated region
        $region33: #{tpu_custom_call.1} parent=31 // pred_check
          %p2688 = pneg %p127
        $region34: #{tpu_custom_call.1} parent=31 // pred_check_branch
          %2690 = sbr.rel (%p2688) target = $region36
        $region35: #{tpu_custom_call.1} parent=31 // pred_region
          %s2692 = ssub.s32 2048, 2048
          %2693 = vsyncadd %s2684, %s2692
          %s2694 = smul.addr %s21, 32
          %s2695 = sadd.s32 %s22, %s2694
          %s2696 = smul.addr %s2695, 64
          %s2697 = scalar_lea.hbm %s3, %s2696
          %s2698 = sshll.u32 %s2687, 4
          %s2699 = int_to_ptr.vmem [resolvable:$true] %s2698
          %2704 = dma.vmem_to_hbm [thread:$0]  %s2699, 2048, %s2697, %s2684, 64, 64, 4
        $region36: #{tpu_custom_call.1} parent=31 // pred_fallthru
          _
      $region32: #{tpu_custom_call.1} parent=5 // pred_fallthru
        _
      %p2705 = scmp.le.s32.totalorder 2, %s12
      // Predicated region
      $region37: #{tpu_custom_call.1} parent=5 // pred_check
        %p2706 = pneg %p2705
      $region38: #{tpu_custom_call.1} parent=5 // pred_check_branch
        %2708 = sbr.rel (%p2706) target = $region40
      $region39: #{tpu_custom_call.1} parent=5 // pred_region
        %s2709 = ssub.s32 %s12, 2
        // Predicated region
        $region41: #{tpu_custom_call.1} parent=39 // pred_check
          %p2710 = pneg %p133
        $region42: #{tpu_custom_call.1} parent=39 // pred_check_branch
          %2712 = sbr.rel (%p2710) target = $region44
        $region43: #{tpu_custom_call.1} parent=39 // pred_region
          %s2713 = sand.u32 %s118, 1
          %s2714 = scalar_lea.sflag [#allocation3], %s2713
          %s2715 = sand.u32 %s118, 1
          %s2716 = smul.addr %s2715, 128
          %s2717 = scalar_lea.vmem [#allocation2], %s2716
          %2718 = dma.done %s2714, 2048
        $region44: #{tpu_custom_call.1} parent=39 // pred_fallthru
          _
      $region40: #{tpu_custom_call.1} parent=5 // pred_fallthru
        _
    $region6: #{tpu_custom_call.1} parent=1 // loop_footer
      %s16 = sadd.s32 1, %s12
    $region7: #{tpu_custom_call.1} parent=1 // loop_footer_branch
      %11 = sbr.rel target = $region3
    $region8: #{tpu_custom_call.1} parent=1 // loop_exit
      _
    %2719 = vsyncpa [#allocation3], 1
    %s2720 = scalar_lea.sflag [#allocation3], 1
    %2721 = vsyncpa %s2720, 1

</llo_original>
